<compile_context>
chip_gen: v6e
topology: v6e:2x2x1
jax: 0.10.0
libtpu: 0.0.40
codegen_flags: <defaults>
</compile_context>

<pallas_src>
import functools

import jax
import jax.numpy as jnp
from jax import lax
from jax.experimental import pallas as pl
from jax.experimental.pallas import tpu as pltpu


def _lstm_linear_kernel(x_ref, wih_ref, whh_ref, b_ref, wlin_ref, blin_ref,
                        h0_ref, c0_ref,
                        y_ref, hn_ref, cn_ref,
                        hs_scr, *, seq_len, hidden_size):
    H = hidden_size
    S = seq_len

    # (1) Hoisted input projection: one batched MXU matmul for all timesteps.
    xproj = (jnp.dot(x_ref[...], wih_ref[...],
                     preferred_element_type=jnp.float32)
             + b_ref[...])                                   # (S, 4H)

    # Hoist the recurrent weight load out of the loop (lives in vregs).
    whh = whh_ref[...]                                       # (H, 4H)

    # (3) Recurrent state carried in vregs across the unrolled loop.
    h = h0_ref[...]                                          # (1, H)
    c = c0_ref[...]                                          # (1, H)

    # (4) Fully-unrolled static time loop (S is a compile-time constant).
    for t in range(S):
        # Only the unavoidable h @ W_hh matmul remains on the serial chain.
        gates = xproj[t:t + 1, :] + jnp.dot(
            h, whh, preferred_element_type=jnp.float32)      # (1, 4H)

        # (5) Two full-vreg transcendentals (EUP), then lane-slice i/f/g/o.
        sg = jax.nn.sigmoid(gates)
        tg = jnp.tanh(gates)
        i_g = sg[:, 0 * H:1 * H]
        f_g = sg[:, 1 * H:2 * H]
        g_g = tg[:, 2 * H:3 * H]
        o_g = sg[:, 3 * H:4 * H]

        c = f_g * c + i_g * g_g
        h = o_g * jnp.tanh(c)

        # Off the recurrence critical path: stash h_t for the batched head.
        hs_scr[t:t + 1, :] = h

    # (2) Linear head applied once to all timesteps + single dense y store.
    y_ref[...] = (jnp.dot(hs_scr[...], wlin_ref[...],
                          preferred_element_type=jnp.float32)
                  + blin_ref[...])
    hn_ref[...] = h
    cn_ref[...] = c


def lstm_linear_forward(x, params, hidden_cell):
    """x: (seq, 1, input).  Returns (y, (h_n, c_n)) like the PyTorch module."""
    S, B, I = x.shape
    assert B == 1, "module's hidden_cell fixes batch=1"
    wih_t, whh_t, b, wlin_t, blin = params
    H = whh_t.shape[0]
    O = wlin_t.shape[1]
    h0 = hidden_cell[0].reshape(1, H)
    c0 = hidden_cell[1].reshape(1, H)
    x2 = x.reshape(S, I)

    # TODO(synk): on v6e/v7x the two hoisted batched matmuls (x @ W_ih^T and
    # hs @ W_lin^T) could take bf16 operands for MXU-native throughput; kept
    # f32 here to preserve the 1e-5 parity check against the f32 reference.

    kernel = functools.partial(_lstm_linear_kernel, seq_len=S, hidden_size=H)

    full = lambda shape: pl.BlockSpec(shape, lambda i: (0, 0))

    y, h_n, c_n = pl.pallas_call(
        kernel,
        grid=(1,),
        in_specs=[
            full((S, I)),        # x
            full((I, 4 * H)),    # W_ih^T
            full((H, 4 * H)),    # W_hh^T
            full((1, 4 * H)),    # b_ih + b_hh
            full((H, O)),        # W_lin^T
            full((1, O)),        # b_lin
            full((1, H)),        # h0
            full((1, H)),        # c0
        ],
        out_specs=[full((S, O)), full((1, H)), full((1, H))],
        out_shape=[
            jax.ShapeDtypeStruct((S, O), jnp.float32),
            jax.ShapeDtypeStruct((1, H), jnp.float32),
            jax.ShapeDtypeStruct((1, H), jnp.float32),
        ],
        scratch_shapes=[
            pltpu.VMEM((S, H), jnp.float32),  # h_t history for the Linear head
        ],
        compiler_params=pltpu.CompilerParams(
            dimension_semantics=("arbitrary",)),
    )(x2, wih_t, whh_t, b, wlin_t, blin, h0, c0)

    return y.reshape(S, 1, O), (h_n.reshape(1, 1, H), c_n.reshape(1, 1, H))


def _reference_forward(x, params, hidden_cell):
    """Pure-JAX reference matching torch.nn.LSTM + nn.Linear semantics."""
    wih_t, whh_t, b, wlin_t, blin = params
    S, B, I = x.shape
    H = whh_t.shape[0]
    h = hidden_cell[0].reshape(1, H)
    c = hidden_cell[1].reshape(1, H)

    def step(carry, x_t):
        h, c = carry
        gates = x_t @ wih_t + h @ whh_t + b
        i_g = jax.nn.sigmoid(gates[:, 0 * H:1 * H])
        f_g = jax.nn.sigmoid(gates[:, 1 * H:2 * H])
        g_g = jnp.tanh(gates[:, 2 * H:3 * H])
        o_g = jax.nn.sigmoid(gates[:, 3 * H:4 * H])
        c = f_g * c + i_g * g_g
        h = o_g * jnp.tanh(c)
        return (h, c), h

    (h, c), hs = lax.scan(step, (h, c), x.reshape(S, 1, I))
    y = hs.reshape(S, H) @ wlin_t + blin
    return y.reshape(S, 1, -1), (h.reshape(1, 1, H), c.reshape(1, 1, H))


if __name__ == "__main__":
    # Small shapes consistent with the module: seq=8, batch=1 (forced by
    # hidden_cell), input_size=32, hidden_size=32, output_size=16.
    SEQ, INPUT, HIDDEN, OUTPUT = 8, 32, 32, 16

    key = jax.random.PRNGKey(0)
    k_x, k_wih, k_whh, k_bih, k_bhh, k_wl, k_bl = jax.random.split(key, 7)

    scale = 1.0 / jnp.sqrt(HIDDEN)
    # PyTorch stores weight_ih as (4H, I), weight_hh as (4H, H); pre-transpose.
    w_ih = jax.random.uniform(k_wih, (4 * HIDDEN, INPUT), jnp.float32, -scale, scale)
    w_hh = jax.random.uniform(k_whh, (4 * HIDDEN, HIDDEN), jnp.float32, -scale, scale)
    b_ih = jax.random.uniform(k_bih, (4 * HIDDEN,), jnp.float32, -scale, scale)
    b_hh = jax.random.uniform(k_bhh, (4 * HIDDEN,), jnp.float32, -scale, scale)
    w_lin = jax.random.uniform(k_wl, (OUTPUT, HIDDEN), jnp.float32, -scale, scale)
    b_lin = jax.random.uniform(k_bl, (OUTPUT,), jnp.float32, -scale, scale)

    params = (
        w_ih.T,                         # (I, 4H)
        w_hh.T,                         # (H, 4H)
        (b_ih + b_hh).reshape(1, -1),   # (1, 4H)
        w_lin.T,                        # (H, O)
        b_lin.reshape(1, -1),           # (1, O)
    )

    # self.hidden_cell = (zeros(1,1,H), zeros(1,1,H))
    hidden_cell = (jnp.zeros((1, 1, HIDDEN), jnp.float32),
                   jnp.zeros((1, 1, HIDDEN), jnp.float32))

    x = jax.random.normal(k_x, (SEQ, 1, INPUT), jnp.float32)

    y, (h_n, c_n) = lstm_linear_forward(x, params, hidden_cell)
    jax.block_until_ready(y)

    y_ref, (h_ref, c_ref) = _reference_forward(x, params, hidden_cell)
    assert y.shape == (SEQ, 1, OUTPUT)
    assert jnp.allclose(y, y_ref, atol=1e-5), "mismatch vs JAX reference"
    assert jnp.allclose(h_n, h_ref, atol=1e-5)
    assert jnp.allclose(c_n, c_ref, atol=1e-5)

    print("KERNEL_OK")
</pallas_src>

<mosaic_0001>
module attributes {stable_mosaic.version = 11 : i64} {
  func.func @_lstm_linear_kernel(%arg0: i32, %arg1: memref<8x32xf32, #tpu.memory_space<vmem>>, %arg2: memref<32x128xf32, #tpu.memory_space<vmem>>, %arg3: memref<32x128xf32, #tpu.memory_space<vmem>>, %arg4: memref<1x128xf32, #tpu.memory_space<vmem>>, %arg5: memref<32x16xf32, #tpu.memory_space<vmem>>, %arg6: memref<1x16xf32, #tpu.memory_space<vmem>>, %arg7: memref<1x32xf32, #tpu.memory_space<vmem>>, %arg8: memref<1x32xf32, #tpu.memory_space<vmem>>, %arg9: memref<8x16xf32, #tpu.memory_space<vmem>>, %arg10: memref<1x32xf32, #tpu.memory_space<vmem>>, %arg11: memref<1x32xf32, #tpu.memory_space<vmem>>, %arg12: memref<8x32xf32, #tpu.memory_space<vmem>>) attributes {dimension_semantics = [#tpu.dimension_semantics<arbitrary>], iteration_bounds = array<i64: 1>, scalar_prefetch = 0 : i64, scratch_operands = 1 : i64, tpu.core_type = #tpu.core_type<tc>, window_params = [{pipeline_mode = #tpu.pipeline_mode<synchronous>, transform_indices = @transform_0, window_bounds = array<i64: 8, 32>}, {pipeline_mode = #tpu.pipeline_mode<synchronous>, transform_indices = @transform_1, window_bounds = array<i64: 32, 128>}, {pipeline_mode = #tpu.pipeline_mode<synchronous>, transform_indices = @transform_2, window_bounds = array<i64: 32, 128>}, {pipeline_mode = #tpu.pipeline_mode<synchronous>, transform_indices = @transform_3, window_bounds = array<i64: 1, 128>}, {pipeline_mode = #tpu.pipeline_mode<synchronous>, transform_indices = @transform_4, window_bounds = array<i64: 32, 16>}, {pipeline_mode = #tpu.pipeline_mode<synchronous>, transform_indices = @transform_5, window_bounds = array<i64: 1, 16>}, {pipeline_mode = #tpu.pipeline_mode<synchronous>, transform_indices = @transform_6, window_bounds = array<i64: 1, 32>}, {pipeline_mode = #tpu.pipeline_mode<synchronous>, transform_indices = @transform_7, window_bounds = array<i64: 1, 32>}, {pipeline_mode = #tpu.pipeline_mode<synchronous>, transform_indices = @transform_8, window_bounds = array<i64: 8, 16>}, {pipeline_mode = #tpu.pipeline_mode<synchronous>, transform_indices = @transform_9, window_bounds = array<i64: 1, 32>}, {pipeline_mode = #tpu.pipeline_mode<synchronous>, transform_indices = @transform_10, window_bounds = array<i64: 1, 32>}]} {
    %c0 = arith.constant 0 : index
    %c0_0 = arith.constant 0 : index
    %0 = vector.load %arg1[%c0, %c0_0] : memref<8x32xf32, #tpu.memory_space<vmem>>, vector<8x32xf32>
    %c0_1 = arith.constant 0 : index
    %c0_2 = arith.constant 0 : index
    %1 = vector.load %arg2[%c0_1, %c0_2] : memref<32x128xf32, #tpu.memory_space<vmem>>, vector<32x128xf32>
    %cst = arith.constant dense<0.000000e+00> : vector<8x128xf32>
    %2 = tpu.matmul %0, %1, %cst {dimension_numbers = #tpu.dot_dimension_numbers<[1], [0], [0], [1], [0, 0, 1, 1], [], []>} : vector<8x32xf32>, vector<32x128xf32>, vector<8x128xf32> -> vector<8x128xf32>
    %c0_3 = arith.constant 0 : index
    %c0_4 = arith.constant 0 : index
    %3 = vector.load %arg4[%c0_3, %c0_4] : memref<1x128xf32, #tpu.memory_space<vmem>>, vector<1x128xf32>
    %4 = vector.broadcast %3 : vector<1x128xf32> to vector<8x128xf32>
    %5 = arith.addf %2, %4 : vector<8x128xf32>
    %c0_5 = arith.constant 0 : index
    %c0_6 = arith.constant 0 : index
    %6 = vector.load %arg3[%c0_5, %c0_6] : memref<32x128xf32, #tpu.memory_space<vmem>>, vector<32x128xf32>
    %c0_7 = arith.constant 0 : index
    %c0_8 = arith.constant 0 : index
    %7 = vector.load %arg7[%c0_7, %c0_8] : memref<1x32xf32, #tpu.memory_space<vmem>>, vector<1x32xf32>
    %c0_9 = arith.constant 0 : index
    %c0_10 = arith.constant 0 : index
    %8 = vector.load %arg8[%c0_9, %c0_10] : memref<1x32xf32, #tpu.memory_space<vmem>>, vector<1x32xf32>
    %9 = vector.extract_strided_slice %5 {offsets = [0, 0], sizes = [1, 128], strides = [1, 1]} : vector<8x128xf32> to vector<1x128xf32>
    %cst_11 = arith.constant dense<0.000000e+00> : vector<1x128xf32>
    %10 = tpu.matmul %7, %6, %cst_11 {dimension_numbers = #tpu.dot_dimension_numbers<[1], [0], [0], [1], [0, 0, 1, 1], [], []>} : vector<1x32xf32>, vector<32x128xf32>, vector<1x128xf32> -> vector<1x128xf32>
    %11 = arith.addf %9, %10 : vector<1x128xf32>
    %12 = arith.negf %11 : vector<1x128xf32>
    %13 = math.exp %12 : vector<1x128xf32>
    %cst_12 = arith.constant 1.000000e+00 : f32
    %14 = vector.broadcast %cst_12 : f32 to vector<1x128xf32>
    %15 = arith.addf %14, %13 : vector<1x128xf32>
    %16 = arith.divf %14, %15 : vector<1x128xf32>
    %17 = math.tanh %11 : vector<1x128xf32>
    %18 = vector.extract_strided_slice %16 {offsets = [0, 0], sizes = [1, 32], strides = [1, 1]} : vector<1x128xf32> to vector<1x32xf32>
    %19 = vector.extract_strided_slice %16 {offsets = [0, 32], sizes = [1, 32], strides = [1, 1]} : vector<1x128xf32> to vector<1x32xf32>
    %20 = vector.extract_strided_slice %17 {offsets = [0, 64], sizes = [1, 32], strides = [1, 1]} : vector<1x128xf32> to vector<1x32xf32>
    %21 = vector.extract_strided_slice %16 {offsets = [0, 96], sizes = [1, 32], strides = [1, 1]} : vector<1x128xf32> to vector<1x32xf32>
    %22 = arith.mulf %19, %8 : vector<1x32xf32>
    %23 = arith.mulf %18, %20 : vector<1x32xf32>
    %24 = arith.addf %22, %23 : vector<1x32xf32>
    %25 = math.tanh %24 : vector<1x32xf32>
    %26 = arith.mulf %21, %25 : vector<1x32xf32>
    %c0_13 = arith.constant 0 : index
    %c0_14 = arith.constant 0 : index
    %27 = vector.load %arg12[%c0_13, %c0_14] : memref<8x32xf32, #tpu.memory_space<vmem>>, vector<1x32xf32>
    tpu.vector_store %arg12[%c0_13, %c0_14], %26 {strides = array<i32>} : memref<8x32xf32, #tpu.memory_space<vmem>>, vector<1x32xf32>,
    %28 = vector.extract_strided_slice %5 {offsets = [1, 0], sizes = [1, 128], strides = [1, 1]} : vector<8x128xf32> to vector<1x128xf32>
    %cst_15 = arith.constant dense<0.000000e+00> : vector<1x128xf32>
    %29 = tpu.matmul %26, %6, %cst_15 {dimension_numbers = #tpu.dot_dimension_numbers<[1], [0], [0], [1], [0, 0, 1, 1], [], []>} : vector<1x32xf32>, vector<32x128xf32>, vector<1x128xf32> -> vector<1x128xf32>
    %30 = arith.addf %28, %29 : vector<1x128xf32>
    %31 = arith.negf %30 : vector<1x128xf32>
    %32 = math.exp %31 : vector<1x128xf32>
    %cst_16 = arith.constant 1.000000e+00 : f32
    %33 = vector.broadcast %cst_16 : f32 to vector<1x128xf32>
    %34 = arith.addf %33, %32 : vector<1x128xf32>
    %35 = arith.divf %33, %34 : vector<1x128xf32>
    %36 = math.tanh %30 : vector<1x128xf32>
    %37 = vector.extract_strided_slice %35 {offsets = [0, 0], sizes = [1, 32], strides = [1, 1]} : vector<1x128xf32> to vector<1x32xf32>
    %38 = vector.extract_strided_slice %35 {offsets = [0, 32], sizes = [1, 32], strides = [1, 1]} : vector<1x128xf32> to vector<1x32xf32>
    %39 = vector.extract_strided_slice %36 {offsets = [0, 64], sizes = [1, 32], strides = [1, 1]} : vector<1x128xf32> to vector<1x32xf32>
    %40 = vector.extract_strided_slice %35 {offsets = [0, 96], sizes = [1, 32], strides = [1, 1]} : vector<1x128xf32> to vector<1x32xf32>
    %41 = arith.mulf %38, %24 : vector<1x32xf32>
    %42 = arith.mulf %37, %39 : vector<1x32xf32>
    %43 = arith.addf %41, %42 : vector<1x32xf32>
    %44 = math.tanh %43 : vector<1x32xf32>
    %45 = arith.mulf %40, %44 : vector<1x32xf32>
    %c1 = arith.constant 1 : index
    %c0_17 = arith.constant 0 : index
    %46 = vector.load %arg12[%c1, %c0_17] : memref<8x32xf32, #tpu.memory_space<vmem>>, vector<1x32xf32>
    tpu.vector_store %arg12[%c1, %c0_17], %45 {strides = array<i32>} : memref<8x32xf32, #tpu.memory_space<vmem>>, vector<1x32xf32>,
    %47 = vector.extract_strided_slice %5 {offsets = [2, 0], sizes = [1, 128], strides = [1, 1]} : vector<8x128xf32> to vector<1x128xf32>
    %cst_18 = arith.constant dense<0.000000e+00> : vector<1x128xf32>
    %48 = tpu.matmul %45, %6, %cst_18 {dimension_numbers = #tpu.dot_dimension_numbers<[1], [0], [0], [1], [0, 0, 1, 1], [], []>} : vector<1x32xf32>, vector<32x128xf32>, vector<1x128xf32> -> vector<1x128xf32>
    %49 = arith.addf %47, %48 : vector<1x128xf32>
    %50 = arith.negf %49 : vector<1x128xf32>
    %51 = math.exp %50 : vector<1x128xf32>
    %cst_19 = arith.constant 1.000000e+00 : f32
    %52 = vector.broadcast %cst_19 : f32 to vector<1x128xf32>
    %53 = arith.addf %52, %51 : vector<1x128xf32>
    %54 = arith.divf %52, %53 : vector<1x128xf32>
    %55 = math.tanh %49 : vector<1x128xf32>
    %56 = vector.extract_strided_slice %54 {offsets = [0, 0], sizes = [1, 32], strides = [1, 1]} : vector<1x128xf32> to vector<1x32xf32>
    %57 = vector.extract_strided_slice %54 {offsets = [0, 32], sizes = [1, 32], strides = [1, 1]} : vector<1x128xf32> to vector<1x32xf32>
    %58 = vector.extract_strided_slice %55 {offsets = [0, 64], sizes = [1, 32], strides = [1, 1]} : vector<1x128xf32> to vector<1x32xf32>
    %59 = vector.extract_strided_slice %54 {offsets = [0, 96], sizes = [1, 32], strides = [1, 1]} : vector<1x128xf32> to vector<1x32xf32>
    %60 = arith.mulf %57, %43 : vector<1x32xf32>
    %61 = arith.mulf %56, %58 : vector<1x32xf32>
    %62 = arith.addf %60, %61 : vector<1x32xf32>
    %63 = math.tanh %62 : vector<1x32xf32>
    %64 = arith.mulf %59, %63 : vector<1x32xf32>
    %c2 = arith.constant 2 : index
    %c0_20 = arith.constant 0 : index
    %65 = vector.load %arg12[%c2, %c0_20] : memref<8x32xf32, #tpu.memory_space<vmem>>, vector<1x32xf32>
    tpu.vector_store %arg12[%c2, %c0_20], %64 {strides = array<i32>} : memref<8x32xf32, #tpu.memory_space<vmem>>, vector<1x32xf32>,
    %66 = vector.extract_strided_slice %5 {offsets = [3, 0], sizes = [1, 128], strides = [1, 1]} : vector<8x128xf32> to vector<1x128xf32>
    %cst_21 = arith.constant dense<0.000000e+00> : vector<1x128xf32>
    %67 = tpu.matmul %64, %6, %cst_21 {dimension_numbers = #tpu.dot_dimension_numbers<[1], [0], [0], [1], [0, 0, 1, 1], [], []>} : vector<1x32xf32>, vector<32x128xf32>, vector<1x128xf32> -> vector<1x128xf32>
    %68 = arith.addf %66, %67 : vector<1x128xf32>
    %69 = arith.negf %68 : vector<1x128xf32>
    %70 = math.exp %69 : vector<1x128xf32>
    %cst_22 = arith.constant 1.000000e+00 : f32
    %71 = vector.broadcast %cst_22 : f32 to vector<1x128xf32>
    %72 = arith.addf %71, %70 : vector<1x128xf32>
    %73 = arith.divf %71, %72 : vector<1x128xf32>
    %74 = math.tanh %68 : vector<1x128xf32>
    %75 = vector.extract_strided_slice %73 {offsets = [0, 0], sizes = [1, 32], strides = [1, 1]} : vector<1x128xf32> to vector<1x32xf32>
    %76 = vector.extract_strided_slice %73 {offsets = [0, 32], sizes = [1, 32], strides = [1, 1]} : vector<1x128xf32> to vector<1x32xf32>
    %77 = vector.extract_strided_slice %74 {offsets = [0, 64], sizes = [1, 32], strides = [1, 1]} : vector<1x128xf32> to vector<1x32xf32>
    %78 = vector.extract_strided_slice %73 {offsets = [0, 96], sizes = [1, 32], strides = [1, 1]} : vector<1x128xf32> to vector<1x32xf32>
    %79 = arith.mulf %76, %62 : vector<1x32xf32>
    %80 = arith.mulf %75, %77 : vector<1x32xf32>
    %81 = arith.addf %79, %80 : vector<1x32xf32>
    %82 = math.tanh %81 : vector<1x32xf32>
    %83 = arith.mulf %78, %82 : vector<1x32xf32>
    %c3 = arith.constant 3 : index
    %c0_23 = arith.constant 0 : index
    %84 = vector.load %arg12[%c3, %c0_23] : memref<8x32xf32, #tpu.memory_space<vmem>>, vector<1x32xf32>
    tpu.vector_store %arg12[%c3, %c0_23], %83 {strides = array<i32>} : memref<8x32xf32, #tpu.memory_space<vmem>>, vector<1x32xf32>,
    %85 = vector.extract_strided_slice %5 {offsets = [4, 0], sizes = [1, 128], strides = [1, 1]} : vector<8x128xf32> to vector<1x128xf32>
    %cst_24 = arith.constant dense<0.000000e+00> : vector<1x128xf32>
    %86 = tpu.matmul %83, %6, %cst_24 {dimension_numbers = #tpu.dot_dimension_numbers<[1], [0], [0], [1], [0, 0, 1, 1], [], []>} : vector<1x32xf32>, vector<32x128xf32>, vector<1x128xf32> -> vector<1x128xf32>
    %87 = arith.addf %85, %86 : vector<1x128xf32>
    %88 = arith.negf %87 : vector<1x128xf32>
    %89 = math.exp %88 : vector<1x128xf32>
    %cst_25 = arith.constant 1.000000e+00 : f32
    %90 = vector.broadcast %cst_25 : f32 to vector<1x128xf32>
    %91 = arith.addf %90, %89 : vector<1x128xf32>
    %92 = arith.divf %90, %91 : vector<1x128xf32>
    %93 = math.tanh %87 : vector<1x128xf32>
    %94 = vector.extract_strided_slice %92 {offsets = [0, 0], sizes = [1, 32], strides = [1, 1]} : vector<1x128xf32> to vector<1x32xf32>
    %95 = vector.extract_strided_slice %92 {offsets = [0, 32], sizes = [1, 32], strides = [1, 1]} : vector<1x128xf32> to vector<1x32xf32>
    %96 = vector.extract_strided_slice %93 {offsets = [0, 64], sizes = [1, 32], strides = [1, 1]} : vector<1x128xf32> to vector<1x32xf32>
    %97 = vector.extract_strided_slice %92 {offsets = [0, 96], sizes = [1, 32], strides = [1, 1]} : vector<1x128xf32> to vector<1x32xf32>
    %98 = arith.mulf %95, %81 : vector<1x32xf32>
    %99 = arith.mulf %94, %96 : vector<1x32xf32>
    %100 = arith.addf %98, %99 : vector<1x32xf32>
    %101 = math.tanh %100 : vector<1x32xf32>
    %102 = arith.mulf %97, %101 : vector<1x32xf32>
    %c4 = arith.constant 4 : index
    %c0_26 = arith.constant 0 : index
    %103 = vector.load %arg12[%c4, %c0_26] : memref<8x32xf32, #tpu.memory_space<vmem>>, vector<1x32xf32>
    tpu.vector_store %arg12[%c4, %c0_26], %102 {strides = array<i32>} : memref<8x32xf32, #tpu.memory_space<vmem>>, vector<1x32xf32>,
    %104 = vector.extract_strided_slice %5 {offsets = [5, 0], sizes = [1, 128], strides = [1, 1]} : vector<8x128xf32> to vector<1x128xf32>
    %cst_27 = arith.constant dense<0.000000e+00> : vector<1x128xf32>
    %105 = tpu.matmul %102, %6, %cst_27 {dimension_numbers = #tpu.dot_dimension_numbers<[1], [0], [0], [1], [0, 0, 1, 1], [], []>} : vector<1x32xf32>, vector<32x128xf32>, vector<1x128xf32> -> vector<1x128xf32>
    %106 = arith.addf %104, %105 : vector<1x128xf32>
    %107 = arith.negf %106 : vector<1x128xf32>
    %108 = math.exp %107 : vector<1x128xf32>
    %cst_28 = arith.constant 1.000000e+00 : f32
    %109 = vector.broadcast %cst_28 : f32 to vector<1x128xf32>
    %110 = arith.addf %109, %108 : vector<1x128xf32>
    %111 = arith.divf %109, %110 : vector<1x128xf32>
    %112 = math.tanh %106 : vector<1x128xf32>
    %113 = vector.extract_strided_slice %111 {offsets = [0, 0], sizes = [1, 32], strides = [1, 1]} : vector<1x128xf32> to vector<1x32xf32>
    %114 = vector.extract_strided_slice %111 {offsets = [0, 32], sizes = [1, 32], strides = [1, 1]} : vector<1x128xf32> to vector<1x32xf32>
    %115 = vector.extract_strided_slice %112 {offsets = [0, 64], sizes = [1, 32], strides = [1, 1]} : vector<1x128xf32> to vector<1x32xf32>
    %116 = vector.extract_strided_slice %111 {offsets = [0, 96], sizes = [1, 32], strides = [1, 1]} : vector<1x128xf32> to vector<1x32xf32>
    %117 = arith.mulf %114, %100 : vector<1x32xf32>
    %118 = arith.mulf %113, %115 : vector<1x32xf32>
    %119 = arith.addf %117, %118 : vector<1x32xf32>
    %120 = math.tanh %119 : vector<1x32xf32>
    %121 = arith.mulf %116, %120 : vector<1x32xf32>
    %c5 = arith.constant 5 : index
    %c0_29 = arith.constant 0 : index
    %122 = vector.load %arg12[%c5, %c0_29] : memref<8x32xf32, #tpu.memory_space<vmem>>, vector<1x32xf32>
    tpu.vector_store %arg12[%c5, %c0_29], %121 {strides = array<i32>} : memref<8x32xf32, #tpu.memory_space<vmem>>, vector<1x32xf32>,
    %123 = vector.extract_strided_slice %5 {offsets = [6, 0], sizes = [1, 128], strides = [1, 1]} : vector<8x128xf32> to vector<1x128xf32>
    %cst_30 = arith.constant dense<0.000000e+00> : vector<1x128xf32>
    %124 = tpu.matmul %121, %6, %cst_30 {dimension_numbers = #tpu.dot_dimension_numbers<[1], [0], [0], [1], [0, 0, 1, 1], [], []>} : vector<1x32xf32>, vector<32x128xf32>, vector<1x128xf32> -> vector<1x128xf32>
    %125 = arith.addf %123, %124 : vector<1x128xf32>
    %126 = arith.negf %125 : vector<1x128xf32>
    %127 = math.exp %126 : vector<1x128xf32>
    %cst_31 = arith.constant 1.000000e+00 : f32
    %128 = vector.broadcast %cst_31 : f32 to vector<1x128xf32>
    %129 = arith.addf %128, %127 : vector<1x128xf32>
    %130 = arith.divf %128, %129 : vector<1x128xf32>
    %131 = math.tanh %125 : vector<1x128xf32>
    %132 = vector.extract_strided_slice %130 {offsets = [0, 0], sizes = [1, 32], strides = [1, 1]} : vector<1x128xf32> to vector<1x32xf32>
    %133 = vector.extract_strided_slice %130 {offsets = [0, 32], sizes = [1, 32], strides = [1, 1]} : vector<1x128xf32> to vector<1x32xf32>
    %134 = vector.extract_strided_slice %131 {offsets = [0, 64], sizes = [1, 32], strides = [1, 1]} : vector<1x128xf32> to vector<1x32xf32>
    %135 = vector.extract_strided_slice %130 {offsets = [0, 96], sizes = [1, 32], strides = [1, 1]} : vector<1x128xf32> to vector<1x32xf32>
    %136 = arith.mulf %133, %119 : vector<1x32xf32>
    %137 = arith.mulf %132, %134 : vector<1x32xf32>
    %138 = arith.addf %136, %137 : vector<1x32xf32>
    %139 = math.tanh %138 : vector<1x32xf32>
    %140 = arith.mulf %135, %139 : vector<1x32xf32>
    %c6 = arith.constant 6 : index
    %c0_32 = arith.constant 0 : index
    %141 = vector.load %arg12[%c6, %c0_32] : memref<8x32xf32, #tpu.memory_space<vmem>>, vector<1x32xf32>
    tpu.vector_store %arg12[%c6, %c0_32], %140 {strides = array<i32>} : memref<8x32xf32, #tpu.memory_space<vmem>>, vector<1x32xf32>,
    %142 = vector.extract_strided_slice %5 {offsets = [7, 0], sizes = [1, 128], strides = [1, 1]} : vector<8x128xf32> to vector<1x128xf32>
    %cst_33 = arith.constant dense<0.000000e+00> : vector<1x128xf32>
    %143 = tpu.matmul %140, %6, %cst_33 {dimension_numbers = #tpu.dot_dimension_numbers<[1], [0], [0], [1], [0, 0, 1, 1], [], []>} : vector<1x32xf32>, vector<32x128xf32>, vector<1x128xf32> -> vector<1x128xf32>
    %144 = arith.addf %142, %143 : vector<1x128xf32>
    %145 = arith.negf %144 : vector<1x128xf32>
    %146 = math.exp %145 : vector<1x128xf32>
    %cst_34 = arith.constant 1.000000e+00 : f32
    %147 = vector.broadcast %cst_34 : f32 to vector<1x128xf32>
    %148 = arith.addf %147, %146 : vector<1x128xf32>
    %149 = arith.divf %147, %148 : vector<1x128xf32>
    %150 = math.tanh %144 : vector<1x128xf32>
    %151 = vector.extract_strided_slice %149 {offsets = [0, 0], sizes = [1, 32], strides = [1, 1]} : vector<1x128xf32> to vector<1x32xf32>
    %152 = vector.extract_strided_slice %149 {offsets = [0, 32], sizes = [1, 32], strides = [1, 1]} : vector<1x128xf32> to vector<1x32xf32>
    %153 = vector.extract_strided_slice %150 {offsets = [0, 64], sizes = [1, 32], strides = [1, 1]} : vector<1x128xf32> to vector<1x32xf32>
    %154 = vector.extract_strided_slice %149 {offsets = [0, 96], sizes = [1, 32], strides = [1, 1]} : vector<1x128xf32> to vector<1x32xf32>
    %155 = arith.mulf %152, %138 : vector<1x32xf32>
    %156 = arith.mulf %151, %153 : vector<1x32xf32>
    %157 = arith.addf %155, %156 : vector<1x32xf32>
    %158 = math.tanh %157 : vector<1x32xf32>
    %159 = arith.mulf %154, %158 : vector<1x32xf32>
    %c7 = arith.constant 7 : index
    %c0_35 = arith.constant 0 : index
    %160 = vector.load %arg12[%c7, %c0_35] : memref<8x32xf32, #tpu.memory_space<vmem>>, vector<1x32xf32>
    tpu.vector_store %arg12[%c7, %c0_35], %159 {strides = array<i32>} : memref<8x32xf32, #tpu.memory_space<vmem>>, vector<1x32xf32>,
    %c0_36 = arith.constant 0 : index
    %c0_37 = arith.constant 0 : index
    %161 = vector.load %arg12[%c0_36, %c0_37] : memref<8x32xf32, #tpu.memory_space<vmem>>, vector<8x32xf32>
    %c0_38 = arith.constant 0 : index
    %c0_39 = arith.constant 0 : index
    %162 = vector.load %arg5[%c0_38, %c0_39] : memref<32x16xf32, #tpu.memory_space<vmem>>, vector<32x16xf32>
    %cst_40 = arith.constant dense<0.000000e+00> : vector<8x16xf32>
    %163 = tpu.matmul %161, %162, %cst_40 {dimension_numbers = #tpu.dot_dimension_numbers<[1], [0], [0], [1], [0, 0, 1, 1], [], []>} : vector<8x32xf32>, vector<32x16xf32>, vector<8x16xf32> -> vector<8x16xf32>
    %c0_41 = arith.constant 0 : index
    %c0_42 = arith.constant 0 : index
    %164 = vector.load %arg6[%c0_41, %c0_42] : memref<1x16xf32, #tpu.memory_space<vmem>>, vector<1x16xf32>
    %165 = vector.broadcast %164 : vector<1x16xf32> to vector<8x16xf32>
    %166 = arith.addf %163, %165 : vector<8x16xf32>
    %c0_43 = arith.constant 0 : index
    %c0_44 = arith.constant 0 : index
    %167 = vector.load %arg9[%c0_43, %c0_44] : memref<8x16xf32, #tpu.memory_space<vmem>>, vector<8x16xf32>
    tpu.vector_store %arg9[%c0_43, %c0_44], %166 {strides = array<i32>} : memref<8x16xf32, #tpu.memory_space<vmem>>, vector<8x16xf32>,
    %c0_45 = arith.constant 0 : index
    %c0_46 = arith.constant 0 : index
    %168 = vector.load %arg10[%c0_45, %c0_46] : memref<1x32xf32, #tpu.memory_space<vmem>>, vector<1x32xf32>
    tpu.vector_store %arg10[%c0_45, %c0_46], %159 {strides = array<i32>} : memref<1x32xf32, #tpu.memory_space<vmem>>, vector<1x32xf32>,
    %c0_47 = arith.constant 0 : index
    %c0_48 = arith.constant 0 : index
    %169 = vector.load %arg11[%c0_47, %c0_48] : memref<1x32xf32, #tpu.memory_space<vmem>>, vector<1x32xf32>
    tpu.vector_store %arg11[%c0_47, %c0_48], %157 {strides = array<i32>} : memref<1x32xf32, #tpu.memory_space<vmem>>, vector<1x32xf32>,
    return
  }
  func.func @transform_0(%arg0: i32) -> (i32, i32) {
    %c0_i32 = arith.constant 0 : i32
    %c0_i32_0 = arith.constant 0 : i32
    %c0_i32_1 = arith.constant 0 : i32
    return %c0_i32, %c0_i32_0 : i32, i32
  }
  func.func @transform_1(%arg0: i32) -> (i32, i32) {
    %c0_i32 = arith.constant 0 : i32
    %c0_i32_0 = arith.constant 0 : i32
    %c0_i32_1 = arith.constant 0 : i32
    return %c0_i32, %c0_i32_0 : i32, i32
  }
  func.func @transform_2(%arg0: i32) -> (i32, i32) {
    %c0_i32 = arith.constant 0 : i32
    %c0_i32_0 = arith.constant 0 : i32
    %c0_i32_1 = arith.constant 0 : i32
    return %c0_i32, %c0_i32_0 : i32, i32
  }
  func.func @transform_3(%arg0: i32) -> (i32, i32) {
    %c0_i32 = arith.constant 0 : i32
    %c0_i32_0 = arith.constant 0 : i32
    %c0_i32_1 = arith.constant 0 : i32
    return %c0_i32, %c0_i32_0 : i32, i32
  }
  func.func @transform_4(%arg0: i32) -> (i32, i32) {
    %c0_i32 = arith.constant 0 : i32
    %c0_i32_0 = arith.constant 0 : i32
    %c0_i32_1 = arith.constant 0 : i32
    return %c0_i32, %c0_i32_0 : i32, i32
  }
  func.func @transform_5(%arg0: i32) -> (i32, i32) {
    %c0_i32 = arith.constant 0 : i32
    %c0_i32_0 = arith.constant 0 : i32
    %c0_i32_1 = arith.constant 0 : i32
    return %c0_i32, %c0_i32_0 : i32, i32
  }
  func.func @transform_6(%arg0: i32) -> (i32, i32) {
    %c0_i32 = arith.constant 0 : i32
    %c0_i32_0 = arith.constant 0 : i32
    %c0_i32_1 = arith.constant 0 : i32
    return %c0_i32, %c0_i32_0 : i32, i32
  }
  func.func @transform_7(%arg0: i32) -> (i32, i32) {
    %c0_i32 = arith.constant 0 : i32
    %c0_i32_0 = arith.constant 0 : i32
    %c0_i32_1 = arith.constant 0 : i32
    return %c0_i32, %c0_i32_0 : i32, i32
  }
  func.func @transform_8(%arg0: i32) -> (i32, i32) {
    %c0_i32 = arith.constant 0 : i32
    %c0_i32_0 = arith.constant 0 : i32
    %c0_i32_1 = arith.constant 0 : i32
    return %c0_i32, %c0_i32_0 : i32, i32
  }
  func.func @transform_9(%arg0: i32) -> (i32, i32) {
    %c0_i32 = arith.constant 0 : i32
    %c0_i32_0 = arith.constant 0 : i32
    %c0_i32_1 = arith.constant 0 : i32
    return %c0_i32, %c0_i32_0 : i32, i32
  }
  func.func @transform_10(%arg0: i32) -> (i32, i32) {
    %c0_i32 = arith.constant 0 : i32
    %c0_i32_0 = arith.constant 0 : i32
    %c0_i32_1 = arith.constant 0 : i32
    return %c0_i32, %c0_i32_0 : i32, i32
  }
}

</mosaic_0001>

<llo_original>
// kernel: tpu_custom_call.1
$region0: #{tpu_custom_call.1}
  #allocation0 [shape = 'u32[]', space=smem, size = 0x4, offset = 0x4, fixed_abs, tag = 'smem constant byte address 0x4 - core index']
  #allocation1 [shape = 'u32[144,128]{1,0:T(1,128)}', space=vmem, size = 0x12000, scoped, tag = 'internal scratch']
  #allocation2 [shape = 'f32[8,32]{1,0:T(8,128)}', space=vmem, size = 0x1000, scoped, tag = 'scratch operand']
  %s0 = inlined_call_operand.vmem [shape: f32[8,32], index: 0, kind: input, shape index: {}]
  %s1 = inlined_call_operand.vmem [shape: f32[32,128], index: 1, kind: input, shape index: {}]
  %s2 = inlined_call_operand.hbm [shape: f32[32,128], index: 2, kind: input, shape index: {}]
  %s3 = inlined_call_operand.vmem [shape: f32[1,128], index: 3, kind: input, shape index: {}]
  %s4 = inlined_call_operand.vmem [shape: f32[32,16], index: 4, kind: input, shape index: {}]
  %s5 = inlined_call_operand.vmem [shape: f32[1,16], index: 5, kind: input, shape index: {}]
  %s6 = inlined_call_operand.vmem [shape: f32[1,32], index: 6, kind: input, shape index: {}]
  %s7 = inlined_call_operand.vmem [shape: f32[1,32], index: 7, kind: input, shape index: {}]
  %s8 = inlined_call_operand.hbm [shape: f32[8,16], index: 8, kind: output, shape index: {0}]
  %s9 = inlined_call_operand.hbm [shape: f32[1,32], index: 9, kind: output, shape index: {1}]
  %s10 = inlined_call_operand.hbm [shape: f32[1,32], index: 10, kind: output, shape index: {2}]
  %11 = xla_tuple %s8, %s9, %s10
  %s12 = sld [smem:[#allocation0]]
  $region62: #{tpu_custom_call.1} parent=0
    _
  %s14 = ssub.s32 1, %s12
  %s15 = scalar_select 0, %s14, %s12
  $region1: #{tpu_custom_call.1} parent=0
    #allocation3 [shape = 'u8[16384]{0}', space=vmem, size = 0x4000, scoped, tag = 'input window, operand 2, single buffered']
    #allocation4 [shape = 's32[1]{0}', space=sflag, size = 0x4, scoped, tag = 'scoped memory for tpu_custom_call.1']
    #allocation5 [shape = 's32[1]{0}', space=sflag, size = 0x4, scoped, tag = 'scoped memory for tpu_custom_call.1']
    #allocation6 [shape = 'u8[4096]{0}', space=vmem, size = 0x1000, scoped, tag = 'output window, operand 0, single buffered']
    #allocation7 [shape = 'u8[512]{0}', space=vmem, size = 0x400, scoped, tag = 'output window, operand 1, single buffered']
    #allocation8 [shape = 's32[1]{0}', space=sflag, size = 0x4, scoped, tag = 'scoped memory for tpu_custom_call.1']
    #allocation9 [shape = 'u8[512]{0}', space=vmem, size = 0x400, scoped, tag = 'output window, operand 2, single buffered']
    %16 = vsyncpa [#allocation4], 0
    %17 = vsyncpa [#allocation5], 0
    %18 = vsyncpa [#allocation8], 0
    // Predicated region
    $region2: #{tpu_custom_call.1} parent=1 // pred_check
      _
    $region3: #{tpu_custom_call.1} parent=1 // pred_check_branch
      %20 = sbr.rel (0) target = $region5
    $region4: #{tpu_custom_call.1} parent=1 // pred_region
      _
    $region5: #{tpu_custom_call.1} parent=1 // pred_fallthru
      _
    // Predicated region
    $region6: #{tpu_custom_call.1} parent=1 // pred_check
      _
    $region7: #{tpu_custom_call.1} parent=1 // pred_check_branch
      %22 = sbr.rel (0) target = $region9
    $region8: #{tpu_custom_call.1} parent=1 // pred_region
      _
    $region9: #{tpu_custom_call.1} parent=1 // pred_fallthru
      _
    // Predicated region
    $region10: #{tpu_custom_call.1} parent=1 // pred_check
      _
    $region11: #{tpu_custom_call.1} parent=1 // pred_check_branch
      %24 = sbr.rel (0) target = $region13
    $region12: #{tpu_custom_call.1} parent=1 // pred_region
      %s26 = ssub.s32 512, 512
      %27 = vsyncadd [#allocation4], %s26
      %s28 = sshll.u32 [#allocation3], 4
      %s29 = int_to_ptr.vmem [resolvable:$true] %s28
      %34 = dma.hbm_to_vmem [thread:$0]  %s2, 512, %s29, [#allocation4], 128, 128, 8
    $region13: #{tpu_custom_call.1} parent=1 // pred_fallthru
      _
    // Predicated region
    $region14: #{tpu_custom_call.1} parent=1 // pred_check
      _
    $region15: #{tpu_custom_call.1} parent=1 // pred_check_branch
      %36 = sbr.rel (0) target = $region17
    $region16: #{tpu_custom_call.1} parent=1 // pred_region
      _
    $region17: #{tpu_custom_call.1} parent=1 // pred_fallthru
      _
    // Predicated region
    $region18: #{tpu_custom_call.1} parent=1 // pred_check
      _
    $region19: #{tpu_custom_call.1} parent=1 // pred_check_branch
      %38 = sbr.rel (0) target = $region21
    $region20: #{tpu_custom_call.1} parent=1 // pred_region
      _
    $region21: #{tpu_custom_call.1} parent=1 // pred_fallthru
      _
    // Predicated region
    $region22: #{tpu_custom_call.1} parent=1 // pred_check
      _
    $region23: #{tpu_custom_call.1} parent=1 // pred_check_branch
      %40 = sbr.rel (0) target = $region25
    $region24: #{tpu_custom_call.1} parent=1 // pred_region
      _
    $region25: #{tpu_custom_call.1} parent=1 // pred_fallthru
      _
    // Predicated region
    $region26: #{tpu_custom_call.1} parent=1 // pred_check
      _
    $region27: #{tpu_custom_call.1} parent=1 // pred_check_branch
      %42 = sbr.rel (0) target = $region29
    $region28: #{tpu_custom_call.1} parent=1 // pred_region
      _
    $region29: #{tpu_custom_call.1} parent=1 // pred_fallthru
      _
    // Predicated region
    $region30: #{tpu_custom_call.1} parent=1 // pred_check
      _
    $region31: #{tpu_custom_call.1} parent=1 // pred_check_branch
      %44 = sbr.rel (0) target = $region33
    $region32: #{tpu_custom_call.1} parent=1 // pred_region
      _
    $region33: #{tpu_custom_call.1} parent=1 // pred_fallthru
      _
    // Predicated region
    $region34: #{tpu_custom_call.1} parent=1 // pred_check
      _
    $region35: #{tpu_custom_call.1} parent=1 // pred_check_branch
      %46 = sbr.rel (0) target = $region37
    $region36: #{tpu_custom_call.1} parent=1 // pred_region
      %47 = dma.done [#allocation4], 512
    $region37: #{tpu_custom_call.1} parent=1 // pred_fallthru
      _
    %v48 = vld [vmem:[%s0] sm:$0xff]
    %v49 = vld [vmem:[%s1] sm:$0xff]
    %v50 = vld [vmem:[%s1 + $0x8] sm:$0xff]
    %v51 = vld [vmem:[%s1 + $0x10] sm:$0xff]
    %v52 = vld [vmem:[%s1 + $0x18] sm:$0xff]
    %v53 = vld [vmem:[%s3] sm:$0x1]
    %v55 = vlaneseq
    %v56 = vshrl.u32 %v55, 7
    %v57 = vsub.s32 0, %v56
    %v58 = vrot.slane %v53, %v57
    %vm60 = vcmask 261120
    %v62 = vsel %vm60, %v48, 0
    %64 = vmatprep.subr.mxu0 0.0
    %65 = vmatpush1.msra.mxu0 0.0
    %66 = vmatprep.subr.mxu0 0.0
    %67 = vmatpush1.msra.mxu0 0.0
    %68 = vmatprep.subr.mxu0 0.0
    %69 = vmatpush1.msra.mxu0 0.0
    %70 = vmatprep.subr.mxu0 0.0
    %71 = vmatpush1.msra.mxu0 0.0
    %72 = vmatprep.subr.mxu0 0.0
    %73 = vmatpush1.msra.mxu0 0.0
    %74 = vmatprep.subr.mxu0 0.0
    %75 = vmatpush1.msra.mxu0 0.0
    %76 = vmatprep.subr.mxu0 0.0
    %77 = vmatpush1.msra.mxu0 0.0
    %78 = vmatprep.subr.mxu0 0.0
    %79 = vmatpush1.msra.mxu0 0.0
    %80 = vmatprep.subr.mxu0 0.0
    %81 = vmatpush1.msra.mxu0 0.0
    %82 = vmatprep.subr.mxu0 0.0
    %83 = vmatpush1.msra.mxu0 0.0
    %84 = vmatprep.subr.mxu0 0.0
    %85 = vmatpush1.msra.mxu0 0.0
    %86 = vmatprep.subr.mxu0 0.0
    %87 = vmatpush1.msra.mxu0 0.0
    %88 = vmatprep.subr.mxu0 0.0
    %89 = vmatpush1.msra.mxu0 %v52
    %90 = vmatprep.subr.mxu0 0.0
    %91 = vmatpush1.msra.mxu0 %v51
    %92 = vmatprep.subr.mxu0 0.0
    %93 = vmatpush1.msra.mxu0 %v50
    %94 = vmatprep.subr.mxu0 0.0
    %95 = vmatpush1.msra.mxu0 %v49
    %96 = vmatprep.subr.mxu0 0.0
    %97 = vmatpush2.msra.mxu0 0.0
    %98 = vmatprep.subr.mxu0 0.0
    %99 = vmatpush2.msra.mxu0 0.0
    %100 = vmatprep.subr.mxu0 0.0
    %101 = vmatpush2.msra.mxu0 0.0
    %102 = vmatprep.subr.mxu0 0.0
    %103 = vmatpush2.msra.mxu0 0.0
    %104 = vmatprep.subr.mxu0 0.0
    %105 = vmatpush2.msra.mxu0 0.0
    %106 = vmatprep.subr.mxu0 0.0
    %107 = vmatpush2.msra.mxu0 0.0
    %108 = vmatprep.subr.mxu0 0.0
    %109 = vmatpush2.msra.mxu0 0.0
    %110 = vmatprep.subr.mxu0 0.0
    %111 = vmatpush2.msra.mxu0 0.0
    %112 = vmatprep.subr.mxu0 0.0
    %113 = vmatpush2.msra.mxu0 0.0
    %114 = vmatprep.subr.mxu0 0.0
    %115 = vmatpush2.msra.mxu0 0.0
    %116 = vmatprep.subr.mxu0 0.0
    %117 = vmatpush2.msra.mxu0 0.0
    %118 = vmatprep.subr.mxu0 0.0
    %119 = vmatpush2.msra.mxu0 0.0
    %120 = vmatprep.subr.mxu0 0.0
    %121 = vmatpush2.msra.mxu0 0.0
    %122 = vmatprep.subr.mxu0 0.0
    %123 = vmatpush2.msra.mxu0 0.0
    %124 = vmatprep.subr.mxu0 0.0
    %125 = vmatpush2.msra.mxu0 0.0
    %126 = vmatprep.subr.mxu0 0.0
    %127 = vmatpush2.msra.mxu0 0.0
    %128 = vmatprep.mubr.f32.mxu0 0.0
    %129 = vmatmul.mubr.f32.gmra.mxu0 %v62
    %v130 = vpop.f32.mrf.mxu0
    %v131 = vadd.f32 %v58, %v130
    %v132 = vpop.f32.mrf.mxu0
    %133 = vdwg.mxu0
    %v134 = vld [vmem:[#allocation3] sm:$0xff]
    %v135 = vld [vmem:[#allocation3 + $0x8] sm:$0xff]
    %v136 = vld [vmem:[#allocation3 + $0x10] sm:$0xff]
    %v137 = vld [vmem:[#allocation3 + $0x18] sm:$0xff]
    %v138 = vld [vmem:[%s6] sm:$0x1]
    %v139 = vld [vmem:[%s7] sm:$0x1]
    %v141 = vsel %vm60, %v138, 0
    %143 = vmatprep.subr.mxu0 0.0
    %144 = vmatpush1.msra.mxu0 0.0
    %145 = vmatprep.subr.mxu0 0.0
    %146 = vmatpush1.msra.mxu0 0.0
    %147 = vmatprep.subr.mxu0 0.0
    %148 = vmatpush1.msra.mxu0 0.0
    %149 = vmatprep.subr.mxu0 0.0
    %150 = vmatpush1.msra.mxu0 0.0
    %151 = vmatprep.subr.mxu0 0.0
    %152 = vmatpush1.msra.mxu0 0.0
    %153 = vmatprep.subr.mxu0 0.0
    %154 = vmatpush1.msra.mxu0 0.0
    %155 = vmatprep.subr.mxu0 0.0
    %156 = vmatpush1.msra.mxu0 0.0
    %157 = vmatprep.subr.mxu0 0.0
    %158 = vmatpush1.msra.mxu0 0.0
    %159 = vmatprep.subr.mxu0 0.0
    %160 = vmatpush1.msra.mxu0 0.0
    %161 = vmatprep.subr.mxu0 0.0
    %162 = vmatpush1.msra.mxu0 0.0
    %163 = vmatprep.subr.mxu0 0.0
    %164 = vmatpush1.msra.mxu0 0.0
    %165 = vmatprep.subr.mxu0 0.0
    %166 = vmatpush1.msra.mxu0 0.0
    %167 = vmatprep.subr.mxu0 0.0
    %168 = vmatpush1.msra.mxu0 %v137
    %169 = vmatprep.subr.mxu0 0.0
    %170 = vmatpush1.msra.mxu0 %v136
    %171 = vmatprep.subr.mxu0 0.0
    %172 = vmatpush1.msra.mxu0 %v135
    %173 = vmatprep.subr.mxu0 0.0
    %174 = vmatpush1.msra.mxu0 %v134
    %175 = vmatprep.subr.mxu0 0.0
    %176 = vmatpush2.msra.mxu0 0.0
    %177 = vmatprep.subr.mxu0 0.0
    %178 = vmatpush2.msra.mxu0 0.0
    %179 = vmatprep.subr.mxu0 0.0
    %180 = vmatpush2.msra.mxu0 0.0
    %181 = vmatprep.subr.mxu0 0.0
    %182 = vmatpush2.msra.mxu0 0.0
    %183 = vmatprep.subr.mxu0 0.0
    %184 = vmatpush2.msra.mxu0 0.0
    %185 = vmatprep.subr.mxu0 0.0
    %186 = vmatpush2.msra.mxu0 0.0
    %187 = vmatprep.subr.mxu0 0.0
    %188 = vmatpush2.msra.mxu0 0.0
    %189 = vmatprep.subr.mxu0 0.0
    %190 = vmatpush2.msra.mxu0 0.0
    %191 = vmatprep.subr.mxu0 0.0
    %192 = vmatpush2.msra.mxu0 0.0
    %193 = vmatprep.subr.mxu0 0.0
    %194 = vmatpush2.msra.mxu0 0.0
    %195 = vmatprep.subr.mxu0 0.0
    %196 = vmatpush2.msra.mxu0 0.0
    %197 = vmatprep.subr.mxu0 0.0
    %198 = vmatpush2.msra.mxu0 0.0
    %199 = vmatprep.subr.mxu0 0.0
    %200 = vmatpush2.msra.mxu0 0.0
    %201 = vmatprep.subr.mxu0 0.0
    %202 = vmatpush2.msra.mxu0 0.0
    %203 = vmatprep.subr.mxu0 0.0
    %204 = vmatpush2.msra.mxu0 0.0
    %205 = vmatprep.subr.mxu0 0.0
    %206 = vmatpush2.msra.mxu0 0.0
    %207 = vmatprep.mubr.f32.mxu0 0.0
    %208 = vmatmul.mubr.f32.gmra.mxu0 %v141
    %v209 = vpop.f32.mrf.mxu0
    %v210 = vadd.f32 0.0, %v209
    %v211 = vpop.f32.mrf.mxu0
    %212 = vdwg.mxu0
    %v213 = vadd.f32 %v131, %v210
    %v214 = vxor.u32 %v213, 2147483648
    %v215 = vmul.f32 %v214, 1.442695
    %v216 = vpow.pop %v215
    %v217 = vadd.f32 %v216, 1.0
    %v218 = vrcp.pop %v217
    %v219 = vmul.f32 1.0, %v218
    %v220 = vtanh.pop %v213
    %v222 = vlaneseq
    %v223 = vshrl.u32 %v222, 7
    %v224 = vsub.s32 0, %v223
    %v225 = vrot.slane %v139, %v224
    %226 = vrot.lane.b32.xlu0 %v225, 32
    %v227 = vpop.permute.xlu0 %226
    %v229 = vmul.f32 %v219, %v227
    %231 = vrot.lane.b32.xlu0 %v220, 64
    %v232 = vpop.permute.xlu0 %231
    %v234 = vmul.f32 %v219, %v232
    %236 = vrot.lane.b32.xlu0 %v234, 32
    %v237 = vpop.permute.xlu0 %236
    %v239 = vadd.f32 %v229, %v237
    %v240 = vtanh.pop %v239
    %242 = vrot.lane.b32.xlu0 %v240, 64
    %v243 = vpop.permute.xlu0 %242
    %v245 = vmul.f32 %v219, %v243
    %247 = vrot.lane.b32.xlu0 %v245, 32
    %v248 = vpop.permute.xlu0 %247
    %vm250 = vcmask 253952
    %251 = vst.msk [vmem:[#allocation2] sm:$0x1] %vm250, %v248
    %v252 = vsel %vm60, %v248, 0
    %254 = vmatprep.subr.mxu0 0.0
    %255 = vmatpush1.msra.mxu0 0.0
    %256 = vmatprep.subr.mxu0 0.0
    %257 = vmatpush1.msra.mxu0 0.0
    %258 = vmatprep.subr.mxu0 0.0
    %259 = vmatpush1.msra.mxu0 0.0
    %260 = vmatprep.subr.mxu0 0.0
    %261 = vmatpush1.msra.mxu0 0.0
    %262 = vmatprep.subr.mxu0 0.0
    %263 = vmatpush1.msra.mxu0 0.0
    %264 = vmatprep.subr.mxu0 0.0
    %265 = vmatpush1.msra.mxu0 0.0
    %266 = vmatprep.subr.mxu0 0.0
    %267 = vmatpush1.msra.mxu0 0.0
    %268 = vmatprep.subr.mxu0 0.0
    %269 = vmatpush1.msra.mxu0 0.0
    %270 = vmatprep.subr.mxu0 0.0
    %271 = vmatpush1.msra.mxu0 0.0
    %272 = vmatprep.subr.mxu0 0.0
    %273 = vmatpush1.msra.mxu0 0.0
    %274 = vmatprep.subr.mxu0 0.0
    %275 = vmatpush1.msra.mxu0 0.0
    %276 = vmatprep.subr.mxu0 0.0
    %277 = vmatpush1.msra.mxu0 0.0
    %278 = vmatprep.subr.mxu0 0.0
    %279 = vmatpush1.msra.mxu0 %v137
    %280 = vmatprep.subr.mxu0 0.0
    %281 = vmatpush1.msra.mxu0 %v136
    %282 = vmatprep.subr.mxu0 0.0
    %283 = vmatpush1.msra.mxu0 %v135
    %284 = vmatprep.subr.mxu0 0.0
    %285 = vmatpush1.msra.mxu0 %v134
    %286 = vmatprep.subr.mxu0 0.0
    %287 = vmatpush2.msra.mxu0 0.0
    %288 = vmatprep.subr.mxu0 0.0
    %289 = vmatpush2.msra.mxu0 0.0
    %290 = vmatprep.subr.mxu0 0.0
    %291 = vmatpush2.msra.mxu0 0.0
    %292 = vmatprep.subr.mxu0 0.0
    %293 = vmatpush2.msra.mxu0 0.0
    %294 = vmatprep.subr.mxu0 0.0
    %295 = vmatpush2.msra.mxu0 0.0
    %296 = vmatprep.subr.mxu0 0.0
    %297 = vmatpush2.msra.mxu0 0.0
    %298 = vmatprep.subr.mxu0 0.0
    %299 = vmatpush2.msra.mxu0 0.0
    %300 = vmatprep.subr.mxu0 0.0
    %301 = vmatpush2.msra.mxu0 0.0
    %302 = vmatprep.subr.mxu0 0.0
    %303 = vmatpush2.msra.mxu0 0.0
    %304 = vmatprep.subr.mxu0 0.0
    %305 = vmatpush2.msra.mxu0 0.0
    %306 = vmatprep.subr.mxu0 0.0
    %307 = vmatpush2.msra.mxu0 0.0
    %308 = vmatprep.subr.mxu0 0.0
    %309 = vmatpush2.msra.mxu0 0.0
    %310 = vmatprep.subr.mxu0 0.0
    %311 = vmatpush2.msra.mxu0 0.0
    %312 = vmatprep.subr.mxu0 0.0
    %313 = vmatpush2.msra.mxu0 0.0
    %314 = vmatprep.subr.mxu0 0.0
    %315 = vmatpush2.msra.mxu0 0.0
    %316 = vmatprep.subr.mxu0 0.0
    %317 = vmatpush2.msra.mxu0 0.0
    %318 = vmatprep.mubr.f32.mxu0 0.0
    %319 = vmatmul.mubr.f32.gmra.mxu0 %v252
    %v320 = vpop.f32.mrf.mxu0
    %v321 = vadd.f32 0.0, %v320
    %v322 = vpop.f32.mrf.mxu0
    %323 = vdwg.mxu0
    %v325 = vrot.slane %v321, 7
    %v327 = vadd.f32 %v131, %v325
    %v328 = vxor.u32 %v327, 2147483648
    %v329 = vmul.f32 %v328, 1.442695
    %v330 = vpow.pop %v329
    %v331 = vadd.f32 %v330, 1.0
    %v332 = vrcp.pop %v331
    %v333 = vmul.f32 1.0, %v332
    %v334 = vtanh.pop %v327
    %v336 = vrot.slane %v239, 7
    %v338 = vmul.f32 %v333, %v336
    %340 = vrot.lane.b32.xlu0 %v334, 64
    %v341 = vpop.permute.xlu0 %340
    %v343 = vmul.f32 %v333, %v341
    %345 = vrot.lane.b32.xlu0 %v343, 32
    %v346 = vpop.permute.xlu0 %345
    %v348 = vadd.f32 %v338, %v346
    %v349 = vtanh.pop %v348
    %351 = vrot.lane.b32.xlu0 %v349, 64
    %v352 = vpop.permute.xlu0 %351
    %v354 = vmul.f32 %v333, %v352
    %356 = vrot.lane.b32.xlu0 %v354, 32
    %v357 = vpop.permute.xlu0 %356
    %vm359 = vcmask 254977
    %360 = vst.msk [vmem:[#allocation2] sm:$0x2] %vm359, %v357
    %v361 = vrot.slane %v354, 1
    %362 = vrot.lane.b32.xlu0 %v361, 32
    %v363 = vpop.permute.xlu0 %362
    %v364 = vsel %vm60, %v363, 0
    %366 = vmatprep.subr.mxu0 0.0
    %367 = vmatpush1.msra.mxu0 0.0
    %368 = vmatprep.subr.mxu0 0.0
    %369 = vmatpush1.msra.mxu0 0.0
    %370 = vmatprep.subr.mxu0 0.0
    %371 = vmatpush1.msra.mxu0 0.0
    %372 = vmatprep.subr.mxu0 0.0
    %373 = vmatpush1.msra.mxu0 0.0
    %374 = vmatprep.subr.mxu0 0.0
    %375 = vmatpush1.msra.mxu0 0.0
    %376 = vmatprep.subr.mxu0 0.0
    %377 = vmatpush1.msra.mxu0 0.0
    %378 = vmatprep.subr.mxu0 0.0
    %379 = vmatpush1.msra.mxu0 0.0
    %380 = vmatprep.subr.mxu0 0.0
    %381 = vmatpush1.msra.mxu0 0.0
    %382 = vmatprep.subr.mxu0 0.0
    %383 = vmatpush1.msra.mxu0 0.0
    %384 = vmatprep.subr.mxu0 0.0
    %385 = vmatpush1.msra.mxu0 0.0
    %386 = vmatprep.subr.mxu0 0.0
    %387 = vmatpush1.msra.mxu0 0.0
    %388 = vmatprep.subr.mxu0 0.0
    %389 = vmatpush1.msra.mxu0 0.0
    %390 = vmatprep.subr.mxu0 0.0
    %391 = vmatpush1.msra.mxu0 %v137
    %392 = vmatprep.subr.mxu0 0.0
    %393 = vmatpush1.msra.mxu0 %v136
    %394 = vmatprep.subr.mxu0 0.0
    %395 = vmatpush1.msra.mxu0 %v135
    %396 = vmatprep.subr.mxu0 0.0
    %397 = vmatpush1.msra.mxu0 %v134
    %398 = vmatprep.subr.mxu0 0.0
    %399 = vmatpush2.msra.mxu0 0.0
    %400 = vmatprep.subr.mxu0 0.0
    %401 = vmatpush2.msra.mxu0 0.0
    %402 = vmatprep.subr.mxu0 0.0
    %403 = vmatpush2.msra.mxu0 0.0
    %404 = vmatprep.subr.mxu0 0.0
    %405 = vmatpush2.msra.mxu0 0.0
    %406 = vmatprep.subr.mxu0 0.0
    %407 = vmatpush2.msra.mxu0 0.0
    %408 = vmatprep.subr.mxu0 0.0
    %409 = vmatpush2.msra.mxu0 0.0
    %410 = vmatprep.subr.mxu0 0.0
    %411 = vmatpush2.msra.mxu0 0.0
    %412 = vmatprep.subr.mxu0 0.0
    %413 = vmatpush2.msra.mxu0 0.0
    %414 = vmatprep.subr.mxu0 0.0
    %415 = vmatpush2.msra.mxu0 0.0
    %416 = vmatprep.subr.mxu0 0.0
    %417 = vmatpush2.msra.mxu0 0.0
    %418 = vmatprep.subr.mxu0 0.0
    %419 = vmatpush2.msra.mxu0 0.0
    %420 = vmatprep.subr.mxu0 0.0
    %421 = vmatpush2.msra.mxu0 0.0
    %422 = vmatprep.subr.mxu0 0.0
    %423 = vmatpush2.msra.mxu0 0.0
    %424 = vmatprep.subr.mxu0 0.0
    %425 = vmatpush2.msra.mxu0 0.0
    %426 = vmatprep.subr.mxu0 0.0
    %427 = vmatpush2.msra.mxu0 0.0
    %428 = vmatprep.subr.mxu0 0.0
    %429 = vmatpush2.msra.mxu0 0.0
    %430 = vmatprep.mubr.f32.mxu0 0.0
    %431 = vmatmul.mubr.f32.gmra.mxu0 %v364
    %v432 = vpop.f32.mrf.mxu0
    %v433 = vadd.f32 0.0, %v432
    %v434 = vpop.f32.mrf.mxu0
    %435 = vdwg.mxu0
    %v437 = vrot.slane %v433, 6
    %v439 = vadd.f32 %v131, %v437
    %v440 = vxor.u32 %v439, 2147483648
    %v441 = vmul.f32 %v440, 1.442695
    %v442 = vpow.pop %v441
    %v443 = vadd.f32 %v442, 1.0
    %v444 = vrcp.pop %v443
    %v445 = vmul.f32 1.0, %v444
    %v446 = vtanh.pop %v439
    %v448 = vrot.slane %v348, 7
    %v450 = vmul.f32 %v445, %v448
    %452 = vrot.lane.b32.xlu0 %v446, 64
    %v453 = vpop.permute.xlu0 %452
    %v455 = vmul.f32 %v445, %v453
    %457 = vrot.lane.b32.xlu0 %v455, 32
    %v458 = vpop.permute.xlu0 %457
    %v460 = vadd.f32 %v450, %v458
    %v461 = vtanh.pop %v460
    %463 = vrot.lane.b32.xlu0 %v461, 64
    %v464 = vpop.permute.xlu0 %463
    %v466 = vmul.f32 %v445, %v464
    %468 = vrot.lane.b32.xlu0 %v466, 32
    %v469 = vpop.permute.xlu0 %468
    %vm471 = vcmask 256002
    %472 = vst.msk [vmem:[#allocation2] sm:$0x4] %vm471, %v469
    %v473 = vrot.slane %v466, 2
    %474 = vrot.lane.b32.xlu0 %v473, 32
    %v475 = vpop.permute.xlu0 %474
    %v476 = vsel %vm60, %v475, 0
    %478 = vmatprep.subr.mxu0 0.0
    %479 = vmatpush1.msra.mxu0 0.0
    %480 = vmatprep.subr.mxu0 0.0
    %481 = vmatpush1.msra.mxu0 0.0
    %482 = vmatprep.subr.mxu0 0.0
    %483 = vmatpush1.msra.mxu0 0.0
    %484 = vmatprep.subr.mxu0 0.0
    %485 = vmatpush1.msra.mxu0 0.0
    %486 = vmatprep.subr.mxu0 0.0
    %487 = vmatpush1.msra.mxu0 0.0
    %488 = vmatprep.subr.mxu0 0.0
    %489 = vmatpush1.msra.mxu0 0.0
    %490 = vmatprep.subr.mxu0 0.0
    %491 = vmatpush1.msra.mxu0 0.0
    %492 = vmatprep.subr.mxu0 0.0
    %493 = vmatpush1.msra.mxu0 0.0
    %494 = vmatprep.subr.mxu0 0.0
    %495 = vmatpush1.msra.mxu0 0.0
    %496 = vmatprep.subr.mxu0 0.0
    %497 = vmatpush1.msra.mxu0 0.0
    %498 = vmatprep.subr.mxu0 0.0
    %499 = vmatpush1.msra.mxu0 0.0
    %500 = vmatprep.subr.mxu0 0.0
    %501 = vmatpush1.msra.mxu0 0.0
    %502 = vmatprep.subr.mxu0 0.0
    %503 = vmatpush1.msra.mxu0 %v137
    %504 = vmatprep.subr.mxu0 0.0
    %505 = vmatpush1.msra.mxu0 %v136
    %506 = vmatprep.subr.mxu0 0.0
    %507 = vmatpush1.msra.mxu0 %v135
    %508 = vmatprep.subr.mxu0 0.0
    %509 = vmatpush1.msra.mxu0 %v134
    %510 = vmatprep.subr.mxu0 0.0
    %511 = vmatpush2.msra.mxu0 0.0
    %512 = vmatprep.subr.mxu0 0.0
    %513 = vmatpush2.msra.mxu0 0.0
    %514 = vmatprep.subr.mxu0 0.0
    %515 = vmatpush2.msra.mxu0 0.0
    %516 = vmatprep.subr.mxu0 0.0
    %517 = vmatpush2.msra.mxu0 0.0
    %518 = vmatprep.subr.mxu0 0.0
    %519 = vmatpush2.msra.mxu0 0.0
    %520 = vmatprep.subr.mxu0 0.0
    %521 = vmatpush2.msra.mxu0 0.0
    %522 = vmatprep.subr.mxu0 0.0
    %523 = vmatpush2.msra.mxu0 0.0
    %524 = vmatprep.subr.mxu0 0.0
    %525 = vmatpush2.msra.mxu0 0.0
    %526 = vmatprep.subr.mxu0 0.0
    %527 = vmatpush2.msra.mxu0 0.0
    %528 = vmatprep.subr.mxu0 0.0
    %529 = vmatpush2.msra.mxu0 0.0
    %530 = vmatprep.subr.mxu0 0.0
    %531 = vmatpush2.msra.mxu0 0.0
    %532 = vmatprep.subr.mxu0 0.0
    %533 = vmatpush2.msra.mxu0 0.0
    %534 = vmatprep.subr.mxu0 0.0
    %535 = vmatpush2.msra.mxu0 0.0
    %536 = vmatprep.subr.mxu0 0.0
    %537 = vmatpush2.msra.mxu0 0.0
    %538 = vmatprep.subr.mxu0 0.0
    %539 = vmatpush2.msra.mxu0 0.0
    %540 = vmatprep.subr.mxu0 0.0
    %541 = vmatpush2.msra.mxu0 0.0
    %542 = vmatprep.mubr.f32.mxu0 0.0
    %543 = vmatmul.mubr.f32.gmra.mxu0 %v476
    %v544 = vpop.f32.mrf.mxu0
    %v545 = vadd.f32 0.0, %v544
    %v546 = vpop.f32.mrf.mxu0
    %547 = vdwg.mxu0
    %v549 = vrot.slane %v545, 5
    %v551 = vadd.f32 %v131, %v549
    %v552 = vxor.u32 %v551, 2147483648
    %v553 = vmul.f32 %v552, 1.442695
    %v554 = vpow.pop %v553
    %v555 = vadd.f32 %v554, 1.0
    %v556 = vrcp.pop %v555
    %v557 = vmul.f32 1.0, %v556
    %v558 = vtanh.pop %v551
    %v560 = vrot.slane %v460, 7
    %v562 = vmul.f32 %v557, %v560
    %564 = vrot.lane.b32.xlu0 %v558, 64
    %v565 = vpop.permute.xlu0 %564
    %v567 = vmul.f32 %v557, %v565
    %569 = vrot.lane.b32.xlu0 %v567, 32
    %v570 = vpop.permute.xlu0 %569
    %v572 = vadd.f32 %v562, %v570
    %v573 = vtanh.pop %v572
    %575 = vrot.lane.b32.xlu0 %v573, 64
    %v576 = vpop.permute.xlu0 %575
    %v578 = vmul.f32 %v557, %v576
    %580 = vrot.lane.b32.xlu0 %v578, 32
    %v581 = vpop.permute.xlu0 %580
    %vm583 = vcmask 257027
    %584 = vst.msk [vmem:[#allocation2] sm:$0x8] %vm583, %v581
    %v585 = vrot.slane %v578, 3
    %586 = vrot.lane.b32.xlu0 %v585, 32
    %v587 = vpop.permute.xlu0 %586
    %v588 = vsel %vm60, %v587, 0
    %590 = vmatprep.subr.mxu0 0.0
    %591 = vmatpush1.msra.mxu0 0.0
    %592 = vmatprep.subr.mxu0 0.0
    %593 = vmatpush1.msra.mxu0 0.0
    %594 = vmatprep.subr.mxu0 0.0
    %595 = vmatpush1.msra.mxu0 0.0
    %596 = vmatprep.subr.mxu0 0.0
    %597 = vmatpush1.msra.mxu0 0.0
    %598 = vmatprep.subr.mxu0 0.0
    %599 = vmatpush1.msra.mxu0 0.0
    %600 = vmatprep.subr.mxu0 0.0
    %601 = vmatpush1.msra.mxu0 0.0
    %602 = vmatprep.subr.mxu0 0.0
    %603 = vmatpush1.msra.mxu0 0.0
    %604 = vmatprep.subr.mxu0 0.0
    %605 = vmatpush1.msra.mxu0 0.0
    %606 = vmatprep.subr.mxu0 0.0
    %607 = vmatpush1.msra.mxu0 0.0
    %608 = vmatprep.subr.mxu0 0.0
    %609 = vmatpush1.msra.mxu0 0.0
    %610 = vmatprep.subr.mxu0 0.0
    %611 = vmatpush1.msra.mxu0 0.0
    %612 = vmatprep.subr.mxu0 0.0
    %613 = vmatpush1.msra.mxu0 0.0
    %614 = vmatprep.subr.mxu0 0.0
    %615 = vmatpush1.msra.mxu0 %v137
    %616 = vmatprep.subr.mxu0 0.0
    %617 = vmatpush1.msra.mxu0 %v136
    %618 = vmatprep.subr.mxu0 0.0
    %619 = vmatpush1.msra.mxu0 %v135
    %620 = vmatprep.subr.mxu0 0.0
    %621 = vmatpush1.msra.mxu0 %v134
    %622 = vmatprep.subr.mxu0 0.0
    %623 = vmatpush2.msra.mxu0 0.0
    %624 = vmatprep.subr.mxu0 0.0
    %625 = vmatpush2.msra.mxu0 0.0
    %626 = vmatprep.subr.mxu0 0.0
    %627 = vmatpush2.msra.mxu0 0.0
    %628 = vmatprep.subr.mxu0 0.0
    %629 = vmatpush2.msra.mxu0 0.0
    %630 = vmatprep.subr.mxu0 0.0
    %631 = vmatpush2.msra.mxu0 0.0
    %632 = vmatprep.subr.mxu0 0.0
    %633 = vmatpush2.msra.mxu0 0.0
    %634 = vmatprep.subr.mxu0 0.0
    %635 = vmatpush2.msra.mxu0 0.0
    %636 = vmatprep.subr.mxu0 0.0
    %637 = vmatpush2.msra.mxu0 0.0
    %638 = vmatprep.subr.mxu0 0.0
    %639 = vmatpush2.msra.mxu0 0.0
    %640 = vmatprep.subr.mxu0 0.0
    %641 = vmatpush2.msra.mxu0 0.0
    %642 = vmatprep.subr.mxu0 0.0
    %643 = vmatpush2.msra.mxu0 0.0
    %644 = vmatprep.subr.mxu0 0.0
    %645 = vmatpush2.msra.mxu0 0.0
    %646 = vmatprep.subr.mxu0 0.0
    %647 = vmatpush2.msra.mxu0 0.0
    %648 = vmatprep.subr.mxu0 0.0
    %649 = vmatpush2.msra.mxu0 0.0
    %650 = vmatprep.subr.mxu0 0.0
    %651 = vmatpush2.msra.mxu0 0.0
    %652 = vmatprep.subr.mxu0 0.0
    %653 = vmatpush2.msra.mxu0 0.0
    %654 = vmatprep.mubr.f32.mxu0 0.0
    %655 = vmatmul.mubr.f32.gmra.mxu0 %v588
    %v656 = vpop.f32.mrf.mxu0
    %v657 = vadd.f32 0.0, %v656
    %v658 = vpop.f32.mrf.mxu0
    %659 = vdwg.mxu0
    %v661 = vrot.slane %v657, 4
    %v663 = vadd.f32 %v131, %v661
    %v664 = vxor.u32 %v663, 2147483648
    %v665 = vmul.f32 %v664, 1.442695
    %v666 = vpow.pop %v665
    %v667 = vadd.f32 %v666, 1.0
    %v668 = vrcp.pop %v667
    %v669 = vmul.f32 1.0, %v668
    %v670 = vtanh.pop %v663
    %v672 = vrot.slane %v572, 7
    %v674 = vmul.f32 %v669, %v672
    %676 = vrot.lane.b32.xlu0 %v670, 64
    %v677 = vpop.permute.xlu0 %676
    %v679 = vmul.f32 %v669, %v677
    %681 = vrot.lane.b32.xlu0 %v679, 32
    %v682 = vpop.permute.xlu0 %681
    %v684 = vadd.f32 %v674, %v682
    %v685 = vtanh.pop %v684
    %687 = vrot.lane.b32.xlu0 %v685, 64
    %v688 = vpop.permute.xlu0 %687
    %v690 = vmul.f32 %v669, %v688
    %692 = vrot.lane.b32.xlu0 %v690, 32
    %v693 = vpop.permute.xlu0 %692
    %vm695 = vcmask 258052
    %696 = vst.msk [vmem:[#allocation2] sm:$0x10] %vm695, %v693
    %v697 = vrot.slane %v690, 4
    %698 = vrot.lane.b32.xlu0 %v697, 32
    %v699 = vpop.permute.xlu0 %698
    %v700 = vsel %vm60, %v699, 0
    %702 = vmatprep.subr.mxu0 0.0
    %703 = vmatpush1.msra.mxu0 0.0
    %704 = vmatprep.subr.mxu0 0.0
    %705 = vmatpush1.msra.mxu0 0.0
    %706 = vmatprep.subr.mxu0 0.0
    %707 = vmatpush1.msra.mxu0 0.0
    %708 = vmatprep.subr.mxu0 0.0
    %709 = vmatpush1.msra.mxu0 0.0
    %710 = vmatprep.subr.mxu0 0.0
    %711 = vmatpush1.msra.mxu0 0.0
    %712 = vmatprep.subr.mxu0 0.0
    %713 = vmatpush1.msra.mxu0 0.0
    %714 = vmatprep.subr.mxu0 0.0
    %715 = vmatpush1.msra.mxu0 0.0
    %716 = vmatprep.subr.mxu0 0.0
    %717 = vmatpush1.msra.mxu0 0.0
    %718 = vmatprep.subr.mxu0 0.0
    %719 = vmatpush1.msra.mxu0 0.0
    %720 = vmatprep.subr.mxu0 0.0
    %721 = vmatpush1.msra.mxu0 0.0
    %722 = vmatprep.subr.mxu0 0.0
    %723 = vmatpush1.msra.mxu0 0.0
    %724 = vmatprep.subr.mxu0 0.0
    %725 = vmatpush1.msra.mxu0 0.0
    %726 = vmatprep.subr.mxu0 0.0
    %727 = vmatpush1.msra.mxu0 %v137
    %728 = vmatprep.subr.mxu0 0.0
    %729 = vmatpush1.msra.mxu0 %v136
    %730 = vmatprep.subr.mxu0 0.0
    %731 = vmatpush1.msra.mxu0 %v135
    %732 = vmatprep.subr.mxu0 0.0
    %733 = vmatpush1.msra.mxu0 %v134
    %734 = vmatprep.subr.mxu0 0.0
    %735 = vmatpush2.msra.mxu0 0.0
    %736 = vmatprep.subr.mxu0 0.0
    %737 = vmatpush2.msra.mxu0 0.0
    %738 = vmatprep.subr.mxu0 0.0
    %739 = vmatpush2.msra.mxu0 0.0
    %740 = vmatprep.subr.mxu0 0.0
    %741 = vmatpush2.msra.mxu0 0.0
    %742 = vmatprep.subr.mxu0 0.0
    %743 = vmatpush2.msra.mxu0 0.0
    %744 = vmatprep.subr.mxu0 0.0
    %745 = vmatpush2.msra.mxu0 0.0
    %746 = vmatprep.subr.mxu0 0.0
    %747 = vmatpush2.msra.mxu0 0.0
    %748 = vmatprep.subr.mxu0 0.0
    %749 = vmatpush2.msra.mxu0 0.0
    %750 = vmatprep.subr.mxu0 0.0
    %751 = vmatpush2.msra.mxu0 0.0
    %752 = vmatprep.subr.mxu0 0.0
    %753 = vmatpush2.msra.mxu0 0.0
    %754 = vmatprep.subr.mxu0 0.0
    %755 = vmatpush2.msra.mxu0 0.0
    %756 = vmatprep.subr.mxu0 0.0
    %757 = vmatpush2.msra.mxu0 0.0
    %758 = vmatprep.subr.mxu0 0.0
    %759 = vmatpush2.msra.mxu0 0.0
    %760 = vmatprep.subr.mxu0 0.0
    %761 = vmatpush2.msra.mxu0 0.0
    %762 = vmatprep.subr.mxu0 0.0
    %763 = vmatpush2.msra.mxu0 0.0
    %764 = vmatprep.subr.mxu0 0.0
    %765 = vmatpush2.msra.mxu0 0.0
    %766 = vmatprep.mubr.f32.mxu0 0.0
    %767 = vmatmul.mubr.f32.gmra.mxu0 %v700
    %v768 = vpop.f32.mrf.mxu0
    %v769 = vadd.f32 0.0, %v768
    %v770 = vpop.f32.mrf.mxu0
    %771 = vdwg.mxu0
    %v773 = vrot.slane %v769, 3
    %v775 = vadd.f32 %v131, %v773
    %v776 = vxor.u32 %v775, 2147483648
    %v777 = vmul.f32 %v776, 1.442695
    %v778 = vpow.pop %v777
    %v779 = vadd.f32 %v778, 1.0
    %v780 = vrcp.pop %v779
    %v781 = vmul.f32 1.0, %v780
    %v782 = vtanh.pop %v775
    %v784 = vrot.slane %v684, 7
    %v786 = vmul.f32 %v781, %v784
    %788 = vrot.lane.b32.xlu0 %v782, 64
    %v789 = vpop.permute.xlu0 %788
    %v791 = vmul.f32 %v781, %v789
    %793 = vrot.lane.b32.xlu0 %v791, 32
    %v794 = vpop.permute.xlu0 %793
    %v796 = vadd.f32 %v786, %v794
    %v797 = vtanh.pop %v796
    %799 = vrot.lane.b32.xlu0 %v797, 64
    %v800 = vpop.permute.xlu0 %799
    %v802 = vmul.f32 %v781, %v800
    %804 = vrot.lane.b32.xlu0 %v802, 32
    %v805 = vpop.permute.xlu0 %804
    %vm807 = vcmask 259077
    %808 = vst.msk [vmem:[#allocation2] sm:$0x20] %vm807, %v805
    %v809 = vrot.slane %v802, 5
    %810 = vrot.lane.b32.xlu0 %v809, 32
    %v811 = vpop.permute.xlu0 %810
    %v812 = vsel %vm60, %v811, 0
    %814 = vmatprep.subr.mxu0 0.0
    %815 = vmatpush1.msra.mxu0 0.0
    %816 = vmatprep.subr.mxu0 0.0
    %817 = vmatpush1.msra.mxu0 0.0
    %818 = vmatprep.subr.mxu0 0.0
    %819 = vmatpush1.msra.mxu0 0.0
    %820 = vmatprep.subr.mxu0 0.0
    %821 = vmatpush1.msra.mxu0 0.0
    %822 = vmatprep.subr.mxu0 0.0
    %823 = vmatpush1.msra.mxu0 0.0
    %824 = vmatprep.subr.mxu0 0.0
    %825 = vmatpush1.msra.mxu0 0.0
    %826 = vmatprep.subr.mxu0 0.0
    %827 = vmatpush1.msra.mxu0 0.0
    %828 = vmatprep.subr.mxu0 0.0
    %829 = vmatpush1.msra.mxu0 0.0
    %830 = vmatprep.subr.mxu0 0.0
    %831 = vmatpush1.msra.mxu0 0.0
    %832 = vmatprep.subr.mxu0 0.0
    %833 = vmatpush1.msra.mxu0 0.0
    %834 = vmatprep.subr.mxu0 0.0
    %835 = vmatpush1.msra.mxu0 0.0
    %836 = vmatprep.subr.mxu0 0.0
    %837 = vmatpush1.msra.mxu0 0.0
    %838 = vmatprep.subr.mxu0 0.0
    %839 = vmatpush1.msra.mxu0 %v137
    %840 = vmatprep.subr.mxu0 0.0
    %841 = vmatpush1.msra.mxu0 %v136
    %842 = vmatprep.subr.mxu0 0.0
    %843 = vmatpush1.msra.mxu0 %v135
    %844 = vmatprep.subr.mxu0 0.0
    %845 = vmatpush1.msra.mxu0 %v134
    %846 = vmatprep.subr.mxu0 0.0
    %847 = vmatpush2.msra.mxu0 0.0
    %848 = vmatprep.subr.mxu0 0.0
    %849 = vmatpush2.msra.mxu0 0.0
    %850 = vmatprep.subr.mxu0 0.0
    %851 = vmatpush2.msra.mxu0 0.0
    %852 = vmatprep.subr.mxu0 0.0
    %853 = vmatpush2.msra.mxu0 0.0
    %854 = vmatprep.subr.mxu0 0.0
    %855 = vmatpush2.msra.mxu0 0.0
    %856 = vmatprep.subr.mxu0 0.0
    %857 = vmatpush2.msra.mxu0 0.0
    %858 = vmatprep.subr.mxu0 0.0
    %859 = vmatpush2.msra.mxu0 0.0
    %860 = vmatprep.subr.mxu0 0.0
    %861 = vmatpush2.msra.mxu0 0.0
    %862 = vmatprep.subr.mxu0 0.0
    %863 = vmatpush2.msra.mxu0 0.0
    %864 = vmatprep.subr.mxu0 0.0
    %865 = vmatpush2.msra.mxu0 0.0
    %866 = vmatprep.subr.mxu0 0.0
    %867 = vmatpush2.msra.mxu0 0.0
    %868 = vmatprep.subr.mxu0 0.0
    %869 = vmatpush2.msra.mxu0 0.0
    %870 = vmatprep.subr.mxu0 0.0
    %871 = vmatpush2.msra.mxu0 0.0
    %872 = vmatprep.subr.mxu0 0.0
    %873 = vmatpush2.msra.mxu0 0.0
    %874 = vmatprep.subr.mxu0 0.0
    %875 = vmatpush2.msra.mxu0 0.0
    %876 = vmatprep.subr.mxu0 0.0
    %877 = vmatpush2.msra.mxu0 0.0
    %878 = vmatprep.mubr.f32.mxu0 0.0
    %879 = vmatmul.mubr.f32.gmra.mxu0 %v812
    %v880 = vpop.f32.mrf.mxu0
    %v881 = vadd.f32 0.0, %v880
    %v882 = vpop.f32.mrf.mxu0
    %883 = vdwg.mxu0
    %v885 = vrot.slane %v881, 2
    %v887 = vadd.f32 %v131, %v885
    %v888 = vxor.u32 %v887, 2147483648
    %v889 = vmul.f32 %v888, 1.442695
    %v890 = vpow.pop %v889
    %v891 = vadd.f32 %v890, 1.0
    %v892 = vrcp.pop %v891
    %v893 = vmul.f32 1.0, %v892
    %v894 = vtanh.pop %v887
    %v896 = vrot.slane %v796, 7
    %v898 = vmul.f32 %v893, %v896
    %900 = vrot.lane.b32.xlu0 %v894, 64
    %v901 = vpop.permute.xlu0 %900
    %v903 = vmul.f32 %v893, %v901
    %905 = vrot.lane.b32.xlu0 %v903, 32
    %v906 = vpop.permute.xlu0 %905
    %v908 = vadd.f32 %v898, %v906
    %v909 = vtanh.pop %v908
    %911 = vrot.lane.b32.xlu0 %v909, 64
    %v912 = vpop.permute.xlu0 %911
    %v914 = vmul.f32 %v893, %v912
    %916 = vrot.lane.b32.xlu0 %v914, 32
    %v917 = vpop.permute.xlu0 %916
    %vm919 = vcmask 260102
    %920 = vst.msk [vmem:[#allocation2] sm:$0x40] %vm919, %v917
    %v921 = vrot.slane %v914, 6
    %922 = vrot.lane.b32.xlu0 %v921, 32
    %v923 = vpop.permute.xlu0 %922
    %v924 = vsel %vm60, %v923, 0
    %926 = vmatprep.subr.mxu0 0.0
    %927 = vmatpush1.msra.mxu0 0.0
    %928 = vmatprep.subr.mxu0 0.0
    %929 = vmatpush1.msra.mxu0 0.0
    %930 = vmatprep.subr.mxu0 0.0
    %931 = vmatpush1.msra.mxu0 0.0
    %932 = vmatprep.subr.mxu0 0.0
    %933 = vmatpush1.msra.mxu0 0.0
    %934 = vmatprep.subr.mxu0 0.0
    %935 = vmatpush1.msra.mxu0 0.0
    %936 = vmatprep.subr.mxu0 0.0
    %937 = vmatpush1.msra.mxu0 0.0
    %938 = vmatprep.subr.mxu0 0.0
    %939 = vmatpush1.msra.mxu0 0.0
    %940 = vmatprep.subr.mxu0 0.0
    %941 = vmatpush1.msra.mxu0 0.0
    %942 = vmatprep.subr.mxu0 0.0
    %943 = vmatpush1.msra.mxu0 0.0
    %944 = vmatprep.subr.mxu0 0.0
    %945 = vmatpush1.msra.mxu0 0.0
    %946 = vmatprep.subr.mxu0 0.0
    %947 = vmatpush1.msra.mxu0 0.0
    %948 = vmatprep.subr.mxu0 0.0
    %949 = vmatpush1.msra.mxu0 0.0
    %950 = vmatprep.subr.mxu0 0.0
    %951 = vmatpush1.msra.mxu0 %v137
    %952 = vmatprep.subr.mxu0 0.0
    %953 = vmatpush1.msra.mxu0 %v136
    %954 = vmatprep.subr.mxu0 0.0
    %955 = vmatpush1.msra.mxu0 %v135
    %956 = vmatprep.subr.mxu0 0.0
    %957 = vmatpush1.msra.mxu0 %v134
    %958 = vmatprep.subr.mxu0 0.0
    %959 = vmatpush2.msra.mxu0 0.0
    %960 = vmatprep.subr.mxu0 0.0
    %961 = vmatpush2.msra.mxu0 0.0
    %962 = vmatprep.subr.mxu0 0.0
    %963 = vmatpush2.msra.mxu0 0.0
    %964 = vmatprep.subr.mxu0 0.0
    %965 = vmatpush2.msra.mxu0 0.0
    %966 = vmatprep.subr.mxu0 0.0
    %967 = vmatpush2.msra.mxu0 0.0
    %968 = vmatprep.subr.mxu0 0.0
    %969 = vmatpush2.msra.mxu0 0.0
    %970 = vmatprep.subr.mxu0 0.0
    %971 = vmatpush2.msra.mxu0 0.0
    %972 = vmatprep.subr.mxu0 0.0
    %973 = vmatpush2.msra.mxu0 0.0
    %974 = vmatprep.subr.mxu0 0.0
    %975 = vmatpush2.msra.mxu0 0.0
    %976 = vmatprep.subr.mxu0 0.0
    %977 = vmatpush2.msra.mxu0 0.0
    %978 = vmatprep.subr.mxu0 0.0
    %979 = vmatpush2.msra.mxu0 0.0
    %980 = vmatprep.subr.mxu0 0.0
    %981 = vmatpush2.msra.mxu0 0.0
    %982 = vmatprep.subr.mxu0 0.0
    %983 = vmatpush2.msra.mxu0 0.0
    %984 = vmatprep.subr.mxu0 0.0
    %985 = vmatpush2.msra.mxu0 0.0
    %986 = vmatprep.subr.mxu0 0.0
    %987 = vmatpush2.msra.mxu0 0.0
    %988 = vmatprep.subr.mxu0 0.0
    %989 = vmatpush2.msra.mxu0 0.0
    %990 = vmatprep.mubr.f32.mxu0 0.0
    %991 = vmatmul.mubr.f32.gmra.mxu0 %v924
    %v992 = vpop.f32.mrf.mxu0
    %v993 = vadd.f32 0.0, %v992
    %v994 = vpop.f32.mrf.mxu0
    %995 = vdwg.mxu0
    %v997 = vrot.slane %v993, 1
    %v999 = vadd.f32 %v131, %v997
    %v1000 = vxor.u32 %v999, 2147483648
    %v1001 = vmul.f32 %v1000, 1.442695
    %v1002 = vpow.pop %v1001
    %v1003 = vadd.f32 %v1002, 1.0
    %v1004 = vrcp.pop %v1003
    %v1005 = vmul.f32 1.0, %v1004
    %v1006 = vtanh.pop %v999
    %v1008 = vrot.slane %v908, 7
    %v1010 = vmul.f32 %v1005, %v1008
    %1012 = vrot.lane.b32.xlu0 %v1006, 64
    %v1013 = vpop.permute.xlu0 %1012
    %v1015 = vmul.f32 %v1005, %v1013
    %1017 = vrot.lane.b32.xlu0 %v1015, 32
    %v1018 = vpop.permute.xlu0 %1017
    %v1020 = vadd.f32 %v1010, %v1018
    %v1021 = vtanh.pop %v1020
    %1023 = vrot.lane.b32.xlu0 %v1021, 64
    %v1024 = vpop.permute.xlu0 %1023
    %v1026 = vmul.f32 %v1005, %v1024
    %1028 = vrot.lane.b32.xlu0 %v1026, 32
    %v1029 = vpop.permute.xlu0 %1028
    %vm1031 = vcmask 261127
    %1032 = vst.msk [vmem:[#allocation2] sm:$0x80] %vm1031, %v1029
    %v1033 = vld [vmem:[#allocation2] sm:$0xff]
    %v1034 = vld [vmem:[%s4] sm:$0xff]
    %v1035 = vld [vmem:[%s4 + $0x8] sm:$0xff]
    %v1036 = vld [vmem:[%s4 + $0x10] sm:$0xff]
    %v1037 = vld [vmem:[%s4 + $0x18] sm:$0xff]
    %v1038 = vld [vmem:[%s5] sm:$0x1]
    %v1040 = vlaneseq
    %v1041 = vshrl.u32 %v1040, 7
    %v1042 = vsub.s32 0, %v1041
    %v1043 = vrot.slane %v1038, %v1042
    %v1046 = vsel %vm60, %v1033, 0
    %1048 = vmatprep.subr.mxu0 0.0
    %1049 = vmatpush1.msra.mxu0 0.0
    %1050 = vmatprep.subr.mxu0 0.0
    %1051 = vmatpush1.msra.mxu0 0.0
    %1052 = vmatprep.subr.mxu0 0.0
    %1053 = vmatpush1.msra.mxu0 0.0
    %1054 = vmatprep.subr.mxu0 0.0
    %1055 = vmatpush1.msra.mxu0 0.0
    %1056 = vmatprep.subr.mxu0 0.0
    %1057 = vmatpush1.msra.mxu0 0.0
    %1058 = vmatprep.subr.mxu0 0.0
    %1059 = vmatpush1.msra.mxu0 0.0
    %1060 = vmatprep.subr.mxu0 0.0
    %1061 = vmatpush1.msra.mxu0 0.0
    %1062 = vmatprep.subr.mxu0 0.0
    %1063 = vmatpush1.msra.mxu0 0.0
    %1064 = vmatprep.subr.mxu0 0.0
    %1065 = vmatpush1.msra.mxu0 0.0
    %1066 = vmatprep.subr.mxu0 0.0
    %1067 = vmatpush1.msra.mxu0 0.0
    %1068 = vmatprep.subr.mxu0 0.0
    %1069 = vmatpush1.msra.mxu0 0.0
    %1070 = vmatprep.subr.mxu0 0.0
    %1071 = vmatpush1.msra.mxu0 0.0
    %1072 = vmatprep.subr.mxu0 0.0
    %1073 = vmatpush1.msra.mxu0 %v1037
    %1074 = vmatprep.subr.mxu0 0.0
    %1075 = vmatpush1.msra.mxu0 %v1036
    %1076 = vmatprep.subr.mxu0 0.0
    %1077 = vmatpush1.msra.mxu0 %v1035
    %1078 = vmatprep.subr.mxu0 0.0
    %1079 = vmatpush1.msra.mxu0 %v1034
    %1080 = vmatprep.subr.mxu0 0.0
    %1081 = vmatpush2.msra.mxu0 0.0
    %1082 = vmatprep.subr.mxu0 0.0
    %1083 = vmatpush2.msra.mxu0 0.0
    %1084 = vmatprep.subr.mxu0 0.0
    %1085 = vmatpush2.msra.mxu0 0.0
    %1086 = vmatprep.subr.mxu0 0.0
    %1087 = vmatpush2.msra.mxu0 0.0
    %1088 = vmatprep.subr.mxu0 0.0
    %1089 = vmatpush2.msra.mxu0 0.0
    %1090 = vmatprep.subr.mxu0 0.0
    %1091 = vmatpush2.msra.mxu0 0.0
    %1092 = vmatprep.subr.mxu0 0.0
    %1093 = vmatpush2.msra.mxu0 0.0
    %1094 = vmatprep.subr.mxu0 0.0
    %1095 = vmatpush2.msra.mxu0 0.0
    %1096 = vmatprep.subr.mxu0 0.0
    %1097 = vmatpush2.msra.mxu0 0.0
    %1098 = vmatprep.subr.mxu0 0.0
    %1099 = vmatpush2.msra.mxu0 0.0
    %1100 = vmatprep.subr.mxu0 0.0
    %1101 = vmatpush2.msra.mxu0 0.0
    %1102 = vmatprep.subr.mxu0 0.0
    %1103 = vmatpush2.msra.mxu0 0.0
    %1104 = vmatprep.subr.mxu0 0.0
    %1105 = vmatpush2.msra.mxu0 0.0
    %1106 = vmatprep.subr.mxu0 0.0
    %1107 = vmatpush2.msra.mxu0 0.0
    %1108 = vmatprep.subr.mxu0 0.0
    %1109 = vmatpush2.msra.mxu0 0.0
    %1110 = vmatprep.subr.mxu0 0.0
    %1111 = vmatpush2.msra.mxu0 0.0
    %1112 = vmatprep.mubr.f32.mxu0 0.0
    %1113 = vmatmul.mubr.f32.gmra.mxu0 %v1046
    %v1114 = vpop.f32.mrf.mxu0
    %v1115 = vadd.f32 %v1043, %v1114
    %v1116 = vpop.f32.mrf.mxu0
    %1117 = vdwg.mxu0
    %vm1118 = vcmask 130048
    %1119 = vst.msk [vmem:[#allocation6] sm:$0xff] %vm1118, %v1115
    %1120 = vst.msk [vmem:[#allocation7 - $0x7] sm:$0x80] %vm1031, %v1029
    %1122 = vrot.lane.b32.xlu0 %v1020, 96
    %v1123 = vpop.permute.xlu0 %1122
    %1125 = vst.msk [vmem:[#allocation9 - $0x7] sm:$0x80] %vm1031, %v1123
    // Predicated region
    $region38: #{tpu_custom_call.1} parent=1 // pred_check
      _
    $region39: #{tpu_custom_call.1} parent=1 // pred_check_branch
      %1127 = sbr.rel (0) target = $region41
    $region40: #{tpu_custom_call.1} parent=1 // pred_region
      %s1129 = ssub.s32 128, 128
      %1130 = vsyncadd [#allocation5], %s1129
      %s1132 = sshll.u32 [#allocation6], 4
      %s1133 = int_to_ptr.vmem [resolvable:$true] %s1132
      %1135 = dma.vmem_to_hbm [thread:$0]  %s1133, 128, %s8, [#allocation5]
    $region41: #{tpu_custom_call.1} parent=1 // pred_fallthru
      _
    // Predicated region
    $region42: #{tpu_custom_call.1} parent=1 // pred_check
      _
    $region43: #{tpu_custom_call.1} parent=1 // pred_check_branch
      %1137 = sbr.rel (0) target = $region45
    $region44: #{tpu_custom_call.1} parent=1 // pred_region
      %s1139 = ssub.s32 16, 16
      %1140 = vsyncadd [#allocation8], %s1139
      %s1142 = sshll.u32 [#allocation7], 4
      %s1143 = int_to_ptr.vmem [resolvable:$true] %s1142
      %1145 = dma.vmem_to_hbm [thread:$0]  %s1143, 16, %s9, [#allocation8]
    $region45: #{tpu_custom_call.1} parent=1 // pred_fallthru
      _
    // Predicated region
    $region46: #{tpu_custom_call.1} parent=1 // pred_check
      _
    $region47: #{tpu_custom_call.1} parent=1 // pred_check_branch
      %1147 = sbr.rel (0) target = $region49
    $region48: #{tpu_custom_call.1} parent=1 // pred_region
      %s1149 = ssub.s32 16, 16
      %1150 = vsyncadd [#allocation8], %s1149
      %s1152 = sshll.u32 [#allocation9], 4
      %s1153 = int_to_ptr.vmem [resolvable:$true] %s1152
      %1155 = dma.vmem_to_hbm [thread:$0]  %s1153, 16, %s10, [#allocation8]
    $region49: #{tpu_custom_call.1} parent=1 // pred_fallthru
      _
    // Predicated region
    $region50: #{tpu_custom_call.1} parent=1 // pred_check
      _
    $region51: #{tpu_custom_call.1} parent=1 // pred_check_branch
      %1157 = sbr.rel (0) target = $region53
    $region52: #{tpu_custom_call.1} parent=1 // pred_region
      %1158 = dma.done [#allocation5], 128
    $region53: #{tpu_custom_call.1} parent=1 // pred_fallthru
      _
    // Predicated region
    $region54: #{tpu_custom_call.1} parent=1 // pred_check
      _
    $region55: #{tpu_custom_call.1} parent=1 // pred_check_branch
      %1160 = sbr.rel (0) target = $region57
    $region56: #{tpu_custom_call.1} parent=1 // pred_region
      %1161 = dma.done [#allocation8], 16
    $region57: #{tpu_custom_call.1} parent=1 // pred_fallthru
      _
    // Predicated region
    $region58: #{tpu_custom_call.1} parent=1 // pred_check
      _
    $region59: #{tpu_custom_call.1} parent=1 // pred_check_branch
      %1163 = sbr.rel (0) target = $region61
    $region60: #{tpu_custom_call.1} parent=1 // pred_region
      %1164 = dma.done [#allocation8], 16
    $region61: #{tpu_custom_call.1} parent=1 // pred_fallthru
      _
    %1165 = vsyncpa [#allocation4], 1
    %1166 = vsyncpa [#allocation5], 1
    %1167 = vsyncpa [#allocation8], 1

</llo_original>
